<compile_context>
chip_gen: v7x
topology: tpu7x:2x2x1
jax: 0.10.0
libtpu: 0.0.40
codegen_flags: <defaults>
</compile_context>

<pallas_src>
import jax
import jax.numpy as jnp
import numpy as np
from jax.experimental import pallas as pl
from jax.experimental.pallas import tpu as pltpu


# ----------------------------- Pallas kernel ------------------------------- #

def _bilstm_layer_kernel(gx_ref, whh_bd_ref, out_ref):
    """Fused bidirectional LSTM recurrence for one layer, whole sequence in one invocation.

    gx_ref:     (T, B, 8H) f32  precomputed input projections + biases, [fwd gates | bwd gates]
                                (g-gate columns already pre-scaled by 2).
    whh_bd_ref: (2H, 8H)   bf16 block-diagonal recurrent weights [[W_hh_f, 0], [0, W_hh_b]]
                                (g-gate columns pre-scaled by 2).
    out_ref:    (T, B, 2H) f32  concatenated [fwd_h_t | bwd_h_t].
    """
    T, B, G2 = gx_ref.shape
    H = G2 // 8
    G = 4 * H

    def cell(pre, c):
        # g-gate pre-activation was pre-scaled by 2, so one sigmoid pass covers all
        # four gates: tanh(x) = 2*sigmoid(2x) - 1 recovered with a single VPU FMA.
        a = jax.nn.sigmoid(pre)                     # (B, 4H) single EUP pass
        i = a[:, 0:H]
        f = a[:, H:2 * H]
        g = 2.0 * a[:, 2 * H:3 * H] - 1.0
        o = a[:, 3 * H:4 * H]
        c_new = f * c + i * g
        h_new = o * jnp.tanh(c_new)
        return h_new, c_new

    zeros = jnp.zeros((B, H), jnp.float32)
    h_f, c_f = zeros, zeros
    h_b, c_b = zeros, zeros

    # Interleaved fwd/bwd recurrence: both directions' MXU/EUP/VPU chains are
    # independent within one iteration, so they overlap in the pipelines.
    for s in range(T):
        tf = s
        tb = T - 1 - s
        # One fused MXU op per step: (B, 2H) @ (2H, 8H) block-diagonal, bf16 in / f32 acc.
        h_cat = jnp.concatenate([h_f, h_b], axis=-1).astype(jnp.bfloat16)
        rec = jnp.dot(h_cat, whh_bd_ref[...], preferred_element_type=jnp.float32)
        pre_f = gx_ref[tf, :, 0:G] + rec[:, 0:G]
        pre_b = gx_ref[tb, :, G:2 * G] + rec[:, G:2 * G]
        h_f, c_f = cell(pre_f, c_f)
        h_b, c_b = cell(pre_b, c_b)
        out_ref[tf, :, 0:H] = h_f
        out_ref[tb, :, H:2 * H] = h_b


def bilstm_layer(gx, w_hh_bd):
    """gx: (T, B, 8H) precomputed gate inputs. w_hh_bd: (2H, 8H) bf16. Returns (T, B, 2H)."""
    T, B, G2 = gx.shape
    H2 = w_hh_bd.shape[0]                 # 2H
    return pl.pallas_call(
        _bilstm_layer_kernel,
        out_shape=jax.ShapeDtypeStruct((T, B, H2), jnp.float32),
        grid_spec=pltpu.PrefetchScalarGridSpec(
            num_scalar_prefetch=0,
            grid=(1,),
            in_specs=[
                pl.BlockSpec((T, B, G2), lambda i: (0, 0, 0)),   # all gate inputs, resident
                pl.BlockSpec((H2, G2), lambda i: (0, 0)),        # block-diag W_hh (resident)
            ],
            out_specs=pl.BlockSpec((T, B, H2), lambda i: (0, 0, 0)),
        ),
        compiler_params=pltpu.CompilerParams(
            dimension_semantics=("arbitrary",),
            vmem_limit_bytes=64 * 1024 * 1024),
    )(gx, w_hh_bd)


# ------------------------------ Model wrapper ------------------------------ #

def lstm_model_forward(x_btd, params):
    """x_btd: (B, T, D) batch_first, like the PyTorch module. Returns (B, num_classes)."""
    x = jnp.transpose(x_btd, (1, 0, 2))                      # time-major (T, B, D)
    for p in params["layers"]:
        T, B, D = x.shape
        # Hoisted batched input projection for both directions (one big matmul, XLA/MXU).
        gx = (x.reshape(T * B, D) @ p["w_ih_k"] + p["b_k"]).reshape(T, B, -1)   # (T, B, 8H)
        x = bilstm_layer(gx, p["w_hh_bd"])                   # (T, B, 2H) -> next layer input
    last = x[-1]                                             # out[:, -1, :] in PyTorch terms
    # Final Linear left to XLA: tiny matmul, below pallas_call break-even.
    return last @ params["fc_w_t"] + params["fc_b"]


def _g_scale_vec(H, width):
    """Scale vector with 2.0 on the tanh-gate (g) columns of a [i,f,g,o]-blocked width."""
    G = 4 * H
    col = np.arange(width)
    s = np.ones((width,), np.float32)
    s[(col % G >= 2 * H) & (col % G < 3 * H)] = 2.0
    return jnp.asarray(s)


def init_params(key, input_size, hidden_size, num_layers, num_classes):
    """Deterministic init mimicking PyTorch's uniform(-1/sqrt(H), 1/sqrt(H)).

    Stores both the canonical parameters (for the pure-JAX reference) and the
    kernel-prepared parameters (g-columns pre-scaled by 2, fused/block-diagonal,
    recurrent weights cast to bf16).
    """
    H = hidden_size
    s = 1.0 / float(np.sqrt(H))

    def u(k, shape, scale):
        return jax.random.uniform(k, shape, jnp.float32, -scale, scale)

    g8 = _g_scale_vec(H, 8 * H)            # scales cols [2H:3H] and [6H:7H]

    layers = []
    for l in range(num_layers):
        in_sz = input_size if l == 0 else 2 * H
        ks = jax.random.split(jax.random.fold_in(key, l), 8)
        w_ih_f = u(ks[0], (in_sz, 4 * H), s)
        w_hh_f = u(ks[1], (H, 4 * H), s)
        b_f = u(ks[2], (1, 4 * H), s) + u(ks[3], (1, 4 * H), s)
        w_ih_b = u(ks[4], (in_sz, 4 * H), s)
        w_hh_b = u(ks[5], (H, 4 * H), s)
        b_b = u(ks[6], (1, 4 * H), s) + u(ks[7], (1, 4 * H), s)

        w_ih = jnp.concatenate([w_ih_f, w_ih_b], axis=1)     # (in, 8H) fused fwd|bwd
        b = jnp.concatenate([b_f, b_b], axis=1)              # (1, 8H)

        # Block-diagonal recurrent weights: [h_f | h_b] (B,2H) @ (2H,8H) -> [fwd gates | bwd gates]
        w_hh_bd = jnp.zeros((2 * H, 8 * H), jnp.float32)
        w_hh_bd = w_hh_bd.at[:H, :4 * H].set(w_hh_f)
        w_hh_bd = w_hh_bd.at[H:, 4 * H:].set(w_hh_b)

        layers.append(dict(
            # canonical (reference) params
            w_ih=w_ih, b=b, w_hh_f=w_hh_f, w_hh_b=w_hh_b,
            # kernel-prepared params (g-cols x2; recurrent weights bf16)
            w_ih_k=w_ih * g8,
            b_k=b * g8,
            w_hh_bd=(w_hh_bd * g8).astype(jnp.bfloat16),
        ))
    kf1, kf2 = jax.random.split(jax.random.fold_in(key, 1000))
    sf = 1.0 / float(np.sqrt(2 * H))
    return {
        "layers": layers,
        "fc_w_t": u(kf1, (2 * H, num_classes), sf),
        "fc_b": u(kf2, (num_classes,), sf),
    }


# --------------------------- Pure-JAX reference ---------------------------- #

def _ref_lstm_direction(x_tbd, w_ih_t, w_hh_t, b):
    H = w_hh_t.shape[0]
    B = x_tbd.shape[1]

    def step(carry, x_t):
        h, c = carry
        gates = x_t @ w_ih_t + h @ w_hh_t + b
        i = jax.nn.sigmoid(gates[:, 0 * H:1 * H])
        f = jax.nn.sigmoid(gates[:, 1 * H:2 * H])
        g = jnp.tanh(gates[:, 2 * H:3 * H])
        o = jax.nn.sigmoid(gates[:, 3 * H:4 * H])
        c = f * c + i * g
        h = o * jnp.tanh(c)
        return (h, c), h

    init = (jnp.zeros((B, H), jnp.float32), jnp.zeros((B, H), jnp.float32))
    _, hs = jax.lax.scan(step, init, x_tbd)
    return hs


def ref_model_forward(x_btd, params):
    x = jnp.transpose(x_btd, (1, 0, 2))
    for p in params["layers"]:
        H = p["w_hh_f"].shape[0]
        G = 4 * H
        fwd = _ref_lstm_direction(x, p["w_ih"][:, :G], p["w_hh_f"], p["b"][:, :G])
        bwd = _ref_lstm_direction(x[::-1], p["w_ih"][:, G:], p["w_hh_b"], p["b"][:, G:])[::-1]
        x = jnp.concatenate([fwd, bwd], axis=-1)
    last = x[-1]
    return last @ params["fc_w_t"] + params["fc_b"]


# ----------------------------------- Main ----------------------------------- #

if __name__ == "__main__":
    B, T, D, H, L, C = 8, 8, 16, 32, 2, 10   # batch, seq, input, hidden, layers, classes

    key = jax.random.PRNGKey(0)
    kx, kp = jax.random.split(key)
    x = jax.random.normal(kx, (B, T, D), jnp.float32)
    params = init_params(kp, D, H, L, C)

    forward = jax.jit(lstm_model_forward)
    out = forward(x, params)
    jax.block_until_ready(out)

    ref = ref_model_forward(x, params)
    # bf16 recurrent matmuls in the kernel vs. f32 reference -> keep tolerance loose.
    np.testing.assert_allclose(np.asarray(out), np.asarray(ref), rtol=2e-2, atol=2e-2)

    print("KERNEL_OK")
</pallas_src>

<mosaic_0001>
module attributes {stable_mosaic.version = 11 : i64} {
  func.func @_bilstm_layer_kernel(%arg0: i32, %arg1: memref<8x8x256xf32, #tpu.memory_space<vmem>>, %arg2: memref<64x256xbf16, #tpu.memory_space<vmem>>, %arg3: memref<8x8x64xf32, #tpu.memory_space<vmem>>) attributes {dimension_semantics = [#tpu.dimension_semantics<arbitrary>], iteration_bounds = array<i64: 1>, scalar_prefetch = 0 : i64, scratch_operands = 0 : i64, tpu.core_type = #tpu.core_type<tc>, window_params = [{pipeline_mode = #tpu.pipeline_mode<synchronous>, transform_indices = @transform_0, window_bounds = array<i64: 8, 8, 256>}, {pipeline_mode = #tpu.pipeline_mode<synchronous>, transform_indices = @transform_1, window_bounds = array<i64: 64, 256>}, {pipeline_mode = #tpu.pipeline_mode<synchronous>, transform_indices = @transform_2, window_bounds = array<i64: 8, 8, 64>}]} {
    %cst = arith.constant 0.000000e+00 : f32
    %0 = vector.broadcast %cst : f32 to vector<8x32xf32>
    %1 = tpu.concatenate %0, %0 in 1 : vector<8x32xf32>, vector<8x32xf32> -> vector<8x64xf32>
    %2 = arith.truncf %1 : vector<8x64xf32> to vector<8x64xbf16>
    %c0 = arith.constant 0 : index
    %c0_0 = arith.constant 0 : index
    %3 = vector.load %arg2[%c0, %c0_0] : memref<64x256xbf16, #tpu.memory_space<vmem>>, vector<64x256xbf16>
    %cst_1 = arith.constant dense<0.000000e+00> : vector<8x256xf32>
    %4 = tpu.matmul %2, %3, %cst_1 {dimension_numbers = #tpu.dot_dimension_numbers<[1], [0], [0], [1], [0, 0, 1, 1], [], []>} : vector<8x64xbf16>, vector<64x256xbf16>, vector<8x256xf32> -> vector<8x256xf32>
    %c0_2 = arith.constant 0 : index
    %c0_3 = arith.constant 0 : index
    %c0_4 = arith.constant 0 : index
    %5 = vector.load %arg1[%c0_2, %c0_3, %c0_4] : memref<8x8x256xf32, #tpu.memory_space<vmem>>, vector<1x8x128xf32>
    %6 = vector.shape_cast %5 : vector<1x8x128xf32> to vector<8x128xf32>
    %7 = vector.extract_strided_slice %4 {offsets = [0, 0], sizes = [8, 128], strides = [1, 1]} : vector<8x256xf32> to vector<8x128xf32>
    %8 = arith.addf %6, %7 : vector<8x128xf32>
    %c7 = arith.constant 7 : index
    %c0_5 = arith.constant 0 : index
    %c128 = arith.constant 128 : index
    %9 = vector.load %arg1[%c7, %c0_5, %c128] : memref<8x8x256xf32, #tpu.memory_space<vmem>>, vector<1x8x128xf32>
    %10 = vector.shape_cast %9 : vector<1x8x128xf32> to vector<8x128xf32>
    %11 = vector.extract_strided_slice %4 {offsets = [0, 128], sizes = [8, 128], strides = [1, 1]} : vector<8x256xf32> to vector<8x128xf32>
    %12 = arith.addf %10, %11 : vector<8x128xf32>
    %13 = arith.negf %8 : vector<8x128xf32>
    %14 = math.exp %13 : vector<8x128xf32>
    %cst_6 = arith.constant 1.000000e+00 : f32
    %15 = vector.broadcast %cst_6 : f32 to vector<8x128xf32>
    %16 = arith.addf %15, %14 : vector<8x128xf32>
    %17 = arith.divf %15, %16 : vector<8x128xf32>
    %18 = vector.extract_strided_slice %17 {offsets = [0, 0], sizes = [8, 32], strides = [1, 1]} : vector<8x128xf32> to vector<8x32xf32>
    %19 = vector.extract_strided_slice %17 {offsets = [0, 32], sizes = [8, 32], strides = [1, 1]} : vector<8x128xf32> to vector<8x32xf32>
    %20 = vector.extract_strided_slice %17 {offsets = [0, 64], sizes = [8, 32], strides = [1, 1]} : vector<8x128xf32> to vector<8x32xf32>
    %cst_7 = arith.constant 2.000000e+00 : f32
    %21 = vector.broadcast %cst_7 : f32 to vector<8x32xf32>
    %22 = arith.mulf %21, %20 : vector<8x32xf32>
    %cst_8 = arith.constant 1.000000e+00 : f32
    %23 = vector.broadcast %cst_8 : f32 to vector<8x32xf32>
    %24 = arith.subf %22, %23 : vector<8x32xf32>
    %25 = vector.extract_strided_slice %17 {offsets = [0, 96], sizes = [8, 32], strides = [1, 1]} : vector<8x128xf32> to vector<8x32xf32>
    %26 = arith.mulf %19, %0 : vector<8x32xf32>
    %27 = arith.mulf %18, %24 : vector<8x32xf32>
    %28 = arith.addf %26, %27 : vector<8x32xf32>
    %29 = math.tanh %28 : vector<8x32xf32>
    %30 = arith.mulf %25, %29 : vector<8x32xf32>
    %31 = arith.negf %12 : vector<8x128xf32>
    %32 = math.exp %31 : vector<8x128xf32>
    %cst_9 = arith.constant 1.000000e+00 : f32
    %33 = vector.broadcast %cst_9 : f32 to vector<8x128xf32>
    %34 = arith.addf %33, %32 : vector<8x128xf32>
    %35 = arith.divf %33, %34 : vector<8x128xf32>
    %36 = vector.extract_strided_slice %35 {offsets = [0, 0], sizes = [8, 32], strides = [1, 1]} : vector<8x128xf32> to vector<8x32xf32>
    %37 = vector.extract_strided_slice %35 {offsets = [0, 32], sizes = [8, 32], strides = [1, 1]} : vector<8x128xf32> to vector<8x32xf32>
    %38 = vector.extract_strided_slice %35 {offsets = [0, 64], sizes = [8, 32], strides = [1, 1]} : vector<8x128xf32> to vector<8x32xf32>
    %cst_10 = arith.constant 2.000000e+00 : f32
    %39 = vector.broadcast %cst_10 : f32 to vector<8x32xf32>
    %40 = arith.mulf %39, %38 : vector<8x32xf32>
    %cst_11 = arith.constant 1.000000e+00 : f32
    %41 = vector.broadcast %cst_11 : f32 to vector<8x32xf32>
    %42 = arith.subf %40, %41 : vector<8x32xf32>
    %43 = vector.extract_strided_slice %35 {offsets = [0, 96], sizes = [8, 32], strides = [1, 1]} : vector<8x128xf32> to vector<8x32xf32>
    %44 = arith.mulf %37, %0 : vector<8x32xf32>
    %45 = arith.mulf %36, %42 : vector<8x32xf32>
    %46 = arith.addf %44, %45 : vector<8x32xf32>
    %47 = math.tanh %46 : vector<8x32xf32>
    %48 = arith.mulf %43, %47 : vector<8x32xf32>
    %c0_12 = arith.constant 0 : index
    %c0_13 = arith.constant 0 : index
    %c0_14 = arith.constant 0 : index
    %49 = vector.load %arg3[%c0_12, %c0_13, %c0_14] : memref<8x8x64xf32, #tpu.memory_space<vmem>>, vector<1x8x32xf32>
    %50 = vector.shape_cast %49 : vector<1x8x32xf32> to vector<8x32xf32>
    %51 = vector.shape_cast %30 : vector<8x32xf32> to vector<1x8x32xf32>
    tpu.vector_store %arg3[%c0_12, %c0_13, %c0_14], %51 {strides = array<i32>} : memref<8x8x64xf32, #tpu.memory_space<vmem>>, vector<1x8x32xf32>,
    %c7_15 = arith.constant 7 : index
    %c0_16 = arith.constant 0 : index
    %c32 = arith.constant 32 : index
    %52 = vector.load %arg3[%c7_15, %c0_16, %c32] : memref<8x8x64xf32, #tpu.memory_space<vmem>>, vector<1x8x32xf32>
    %53 = vector.shape_cast %52 : vector<1x8x32xf32> to vector<8x32xf32>
    %54 = vector.shape_cast %48 : vector<8x32xf32> to vector<1x8x32xf32>
    tpu.vector_store %arg3[%c7_15, %c0_16, %c32], %54 {strides = array<i32>} : memref<8x8x64xf32, #tpu.memory_space<vmem>>, vector<1x8x32xf32>,
    %55 = tpu.concatenate %30, %48 in 1 : vector<8x32xf32>, vector<8x32xf32> -> vector<8x64xf32>
    %56 = arith.truncf %55 : vector<8x64xf32> to vector<8x64xbf16>
    %c0_17 = arith.constant 0 : index
    %c0_18 = arith.constant 0 : index
    %57 = vector.load %arg2[%c0_17, %c0_18] : memref<64x256xbf16, #tpu.memory_space<vmem>>, vector<64x256xbf16>
    %cst_19 = arith.constant dense<0.000000e+00> : vector<8x256xf32>
    %58 = tpu.matmul %56, %57, %cst_19 {dimension_numbers = #tpu.dot_dimension_numbers<[1], [0], [0], [1], [0, 0, 1, 1], [], []>} : vector<8x64xbf16>, vector<64x256xbf16>, vector<8x256xf32> -> vector<8x256xf32>
    %c1 = arith.constant 1 : index
    %c0_20 = arith.constant 0 : index
    %c0_21 = arith.constant 0 : index
    %59 = vector.load %arg1[%c1, %c0_20, %c0_21] : memref<8x8x256xf32, #tpu.memory_space<vmem>>, vector<1x8x128xf32>
    %60 = vector.shape_cast %59 : vector<1x8x128xf32> to vector<8x128xf32>
    %61 = vector.extract_strided_slice %58 {offsets = [0, 0], sizes = [8, 128], strides = [1, 1]} : vector<8x256xf32> to vector<8x128xf32>
    %62 = arith.addf %60, %61 : vector<8x128xf32>
    %c6 = arith.constant 6 : index
    %c0_22 = arith.constant 0 : index
    %c128_23 = arith.constant 128 : index
    %63 = vector.load %arg1[%c6, %c0_22, %c128_23] : memref<8x8x256xf32, #tpu.memory_space<vmem>>, vector<1x8x128xf32>
    %64 = vector.shape_cast %63 : vector<1x8x128xf32> to vector<8x128xf32>
    %65 = vector.extract_strided_slice %58 {offsets = [0, 128], sizes = [8, 128], strides = [1, 1]} : vector<8x256xf32> to vector<8x128xf32>
    %66 = arith.addf %64, %65 : vector<8x128xf32>
    %67 = arith.negf %62 : vector<8x128xf32>
    %68 = math.exp %67 : vector<8x128xf32>
    %cst_24 = arith.constant 1.000000e+00 : f32
    %69 = vector.broadcast %cst_24 : f32 to vector<8x128xf32>
    %70 = arith.addf %69, %68 : vector<8x128xf32>
    %71 = arith.divf %69, %70 : vector<8x128xf32>
    %72 = vector.extract_strided_slice %71 {offsets = [0, 0], sizes = [8, 32], strides = [1, 1]} : vector<8x128xf32> to vector<8x32xf32>
    %73 = vector.extract_strided_slice %71 {offsets = [0, 32], sizes = [8, 32], strides = [1, 1]} : vector<8x128xf32> to vector<8x32xf32>
    %74 = vector.extract_strided_slice %71 {offsets = [0, 64], sizes = [8, 32], strides = [1, 1]} : vector<8x128xf32> to vector<8x32xf32>
    %cst_25 = arith.constant 2.000000e+00 : f32
    %75 = vector.broadcast %cst_25 : f32 to vector<8x32xf32>
    %76 = arith.mulf %75, %74 : vector<8x32xf32>
    %cst_26 = arith.constant 1.000000e+00 : f32
    %77 = vector.broadcast %cst_26 : f32 to vector<8x32xf32>
    %78 = arith.subf %76, %77 : vector<8x32xf32>
    %79 = vector.extract_strided_slice %71 {offsets = [0, 96], sizes = [8, 32], strides = [1, 1]} : vector<8x128xf32> to vector<8x32xf32>
    %80 = arith.mulf %73, %28 : vector<8x32xf32>
    %81 = arith.mulf %72, %78 : vector<8x32xf32>
    %82 = arith.addf %80, %81 : vector<8x32xf32>
    %83 = math.tanh %82 : vector<8x32xf32>
    %84 = arith.mulf %79, %83 : vector<8x32xf32>
    %85 = arith.negf %66 : vector<8x128xf32>
    %86 = math.exp %85 : vector<8x128xf32>
    %cst_27 = arith.constant 1.000000e+00 : f32
    %87 = vector.broadcast %cst_27 : f32 to vector<8x128xf32>
    %88 = arith.addf %87, %86 : vector<8x128xf32>
    %89 = arith.divf %87, %88 : vector<8x128xf32>
    %90 = vector.extract_strided_slice %89 {offsets = [0, 0], sizes = [8, 32], strides = [1, 1]} : vector<8x128xf32> to vector<8x32xf32>
    %91 = vector.extract_strided_slice %89 {offsets = [0, 32], sizes = [8, 32], strides = [1, 1]} : vector<8x128xf32> to vector<8x32xf32>
    %92 = vector.extract_strided_slice %89 {offsets = [0, 64], sizes = [8, 32], strides = [1, 1]} : vector<8x128xf32> to vector<8x32xf32>
    %cst_28 = arith.constant 2.000000e+00 : f32
    %93 = vector.broadcast %cst_28 : f32 to vector<8x32xf32>
    %94 = arith.mulf %93, %92 : vector<8x32xf32>
    %cst_29 = arith.constant 1.000000e+00 : f32
    %95 = vector.broadcast %cst_29 : f32 to vector<8x32xf32>
    %96 = arith.subf %94, %95 : vector<8x32xf32>
    %97 = vector.extract_strided_slice %89 {offsets = [0, 96], sizes = [8, 32], strides = [1, 1]} : vector<8x128xf32> to vector<8x32xf32>
    %98 = arith.mulf %91, %46 : vector<8x32xf32>
    %99 = arith.mulf %90, %96 : vector<8x32xf32>
    %100 = arith.addf %98, %99 : vector<8x32xf32>
    %101 = math.tanh %100 : vector<8x32xf32>
    %102 = arith.mulf %97, %101 : vector<8x32xf32>
    %c1_30 = arith.constant 1 : index
    %c0_31 = arith.constant 0 : index
    %c0_32 = arith.constant 0 : index
    %103 = vector.load %arg3[%c1_30, %c0_31, %c0_32] : memref<8x8x64xf32, #tpu.memory_space<vmem>>, vector<1x8x32xf32>
    %104 = vector.shape_cast %103 : vector<1x8x32xf32> to vector<8x32xf32>
    %105 = vector.shape_cast %84 : vector<8x32xf32> to vector<1x8x32xf32>
    tpu.vector_store %arg3[%c1_30, %c0_31, %c0_32], %105 {strides = array<i32>} : memref<8x8x64xf32, #tpu.memory_space<vmem>>, vector<1x8x32xf32>,
    %c6_33 = arith.constant 6 : index
    %c0_34 = arith.constant 0 : index
    %c32_35 = arith.constant 32 : index
    %106 = vector.load %arg3[%c6_33, %c0_34, %c32_35] : memref<8x8x64xf32, #tpu.memory_space<vmem>>, vector<1x8x32xf32>
    %107 = vector.shape_cast %106 : vector<1x8x32xf32> to vector<8x32xf32>
    %108 = vector.shape_cast %102 : vector<8x32xf32> to vector<1x8x32xf32>
    tpu.vector_store %arg3[%c6_33, %c0_34, %c32_35], %108 {strides = array<i32>} : memref<8x8x64xf32, #tpu.memory_space<vmem>>, vector<1x8x32xf32>,
    %109 = tpu.concatenate %84, %102 in 1 : vector<8x32xf32>, vector<8x32xf32> -> vector<8x64xf32>
    %110 = arith.truncf %109 : vector<8x64xf32> to vector<8x64xbf16>
    %c0_36 = arith.constant 0 : index
    %c0_37 = arith.constant 0 : index
    %111 = vector.load %arg2[%c0_36, %c0_37] : memref<64x256xbf16, #tpu.memory_space<vmem>>, vector<64x256xbf16>
    %cst_38 = arith.constant dense<0.000000e+00> : vector<8x256xf32>
    %112 = tpu.matmul %110, %111, %cst_38 {dimension_numbers = #tpu.dot_dimension_numbers<[1], [0], [0], [1], [0, 0, 1, 1], [], []>} : vector<8x64xbf16>, vector<64x256xbf16>, vector<8x256xf32> -> vector<8x256xf32>
    %c2 = arith.constant 2 : index
    %c0_39 = arith.constant 0 : index
    %c0_40 = arith.constant 0 : index
    %113 = vector.load %arg1[%c2, %c0_39, %c0_40] : memref<8x8x256xf32, #tpu.memory_space<vmem>>, vector<1x8x128xf32>
    %114 = vector.shape_cast %113 : vector<1x8x128xf32> to vector<8x128xf32>
    %115 = vector.extract_strided_slice %112 {offsets = [0, 0], sizes = [8, 128], strides = [1, 1]} : vector<8x256xf32> to vector<8x128xf32>
    %116 = arith.addf %114, %115 : vector<8x128xf32>
    %c5 = arith.constant 5 : index
    %c0_41 = arith.constant 0 : index
    %c128_42 = arith.constant 128 : index
    %117 = vector.load %arg1[%c5, %c0_41, %c128_42] : memref<8x8x256xf32, #tpu.memory_space<vmem>>, vector<1x8x128xf32>
    %118 = vector.shape_cast %117 : vector<1x8x128xf32> to vector<8x128xf32>
    %119 = vector.extract_strided_slice %112 {offsets = [0, 128], sizes = [8, 128], strides = [1, 1]} : vector<8x256xf32> to vector<8x128xf32>
    %120 = arith.addf %118, %119 : vector<8x128xf32>
    %121 = arith.negf %116 : vector<8x128xf32>
    %122 = math.exp %121 : vector<8x128xf32>
    %cst_43 = arith.constant 1.000000e+00 : f32
    %123 = vector.broadcast %cst_43 : f32 to vector<8x128xf32>
    %124 = arith.addf %123, %122 : vector<8x128xf32>
    %125 = arith.divf %123, %124 : vector<8x128xf32>
    %126 = vector.extract_strided_slice %125 {offsets = [0, 0], sizes = [8, 32], strides = [1, 1]} : vector<8x128xf32> to vector<8x32xf32>
    %127 = vector.extract_strided_slice %125 {offsets = [0, 32], sizes = [8, 32], strides = [1, 1]} : vector<8x128xf32> to vector<8x32xf32>
    %128 = vector.extract_strided_slice %125 {offsets = [0, 64], sizes = [8, 32], strides = [1, 1]} : vector<8x128xf32> to vector<8x32xf32>
    %cst_44 = arith.constant 2.000000e+00 : f32
    %129 = vector.broadcast %cst_44 : f32 to vector<8x32xf32>
    %130 = arith.mulf %129, %128 : vector<8x32xf32>
    %cst_45 = arith.constant 1.000000e+00 : f32
    %131 = vector.broadcast %cst_45 : f32 to vector<8x32xf32>
    %132 = arith.subf %130, %131 : vector<8x32xf32>
    %133 = vector.extract_strided_slice %125 {offsets = [0, 96], sizes = [8, 32], strides = [1, 1]} : vector<8x128xf32> to vector<8x32xf32>
    %134 = arith.mulf %127, %82 : vector<8x32xf32>
    %135 = arith.mulf %126, %132 : vector<8x32xf32>
    %136 = arith.addf %134, %135 : vector<8x32xf32>
    %137 = math.tanh %136 : vector<8x32xf32>
    %138 = arith.mulf %133, %137 : vector<8x32xf32>
    %139 = arith.negf %120 : vector<8x128xf32>
    %140 = math.exp %139 : vector<8x128xf32>
    %cst_46 = arith.constant 1.000000e+00 : f32
    %141 = vector.broadcast %cst_46 : f32 to vector<8x128xf32>
    %142 = arith.addf %141, %140 : vector<8x128xf32>
    %143 = arith.divf %141, %142 : vector<8x128xf32>
    %144 = vector.extract_strided_slice %143 {offsets = [0, 0], sizes = [8, 32], strides = [1, 1]} : vector<8x128xf32> to vector<8x32xf32>
    %145 = vector.extract_strided_slice %143 {offsets = [0, 32], sizes = [8, 32], strides = [1, 1]} : vector<8x128xf32> to vector<8x32xf32>
    %146 = vector.extract_strided_slice %143 {offsets = [0, 64], sizes = [8, 32], strides = [1, 1]} : vector<8x128xf32> to vector<8x32xf32>
    %cst_47 = arith.constant 2.000000e+00 : f32
    %147 = vector.broadcast %cst_47 : f32 to vector<8x32xf32>
    %148 = arith.mulf %147, %146 : vector<8x32xf32>
    %cst_48 = arith.constant 1.000000e+00 : f32
    %149 = vector.broadcast %cst_48 : f32 to vector<8x32xf32>
    %150 = arith.subf %148, %149 : vector<8x32xf32>
    %151 = vector.extract_strided_slice %143 {offsets = [0, 96], sizes = [8, 32], strides = [1, 1]} : vector<8x128xf32> to vector<8x32xf32>
    %152 = arith.mulf %145, %100 : vector<8x32xf32>
    %153 = arith.mulf %144, %150 : vector<8x32xf32>
    %154 = arith.addf %152, %153 : vector<8x32xf32>
    %155 = math.tanh %154 : vector<8x32xf32>
    %156 = arith.mulf %151, %155 : vector<8x32xf32>
    %c2_49 = arith.constant 2 : index
    %c0_50 = arith.constant 0 : index
    %c0_51 = arith.constant 0 : index
    %157 = vector.load %arg3[%c2_49, %c0_50, %c0_51] : memref<8x8x64xf32, #tpu.memory_space<vmem>>, vector<1x8x32xf32>
    %158 = vector.shape_cast %157 : vector<1x8x32xf32> to vector<8x32xf32>
    %159 = vector.shape_cast %138 : vector<8x32xf32> to vector<1x8x32xf32>
    tpu.vector_store %arg3[%c2_49, %c0_50, %c0_51], %159 {strides = array<i32>} : memref<8x8x64xf32, #tpu.memory_space<vmem>>, vector<1x8x32xf32>,
    %c5_52 = arith.constant 5 : index
    %c0_53 = arith.constant 0 : index
    %c32_54 = arith.constant 32 : index
    %160 = vector.load %arg3[%c5_52, %c0_53, %c32_54] : memref<8x8x64xf32, #tpu.memory_space<vmem>>, vector<1x8x32xf32>
    %161 = vector.shape_cast %160 : vector<1x8x32xf32> to vector<8x32xf32>
    %162 = vector.shape_cast %156 : vector<8x32xf32> to vector<1x8x32xf32>
    tpu.vector_store %arg3[%c5_52, %c0_53, %c32_54], %162 {strides = array<i32>} : memref<8x8x64xf32, #tpu.memory_space<vmem>>, vector<1x8x32xf32>,
    %163 = tpu.concatenate %138, %156 in 1 : vector<8x32xf32>, vector<8x32xf32> -> vector<8x64xf32>
    %164 = arith.truncf %163 : vector<8x64xf32> to vector<8x64xbf16>
    %c0_55 = arith.constant 0 : index
    %c0_56 = arith.constant 0 : index
    %165 = vector.load %arg2[%c0_55, %c0_56] : memref<64x256xbf16, #tpu.memory_space<vmem>>, vector<64x256xbf16>
    %cst_57 = arith.constant dense<0.000000e+00> : vector<8x256xf32>
    %166 = tpu.matmul %164, %165, %cst_57 {dimension_numbers = #tpu.dot_dimension_numbers<[1], [0], [0], [1], [0, 0, 1, 1], [], []>} : vector<8x64xbf16>, vector<64x256xbf16>, vector<8x256xf32> -> vector<8x256xf32>
    %c3 = arith.constant 3 : index
    %c0_58 = arith.constant 0 : index
    %c0_59 = arith.constant 0 : index
    %167 = vector.load %arg1[%c3, %c0_58, %c0_59] : memref<8x8x256xf32, #tpu.memory_space<vmem>>, vector<1x8x128xf32>
    %168 = vector.shape_cast %167 : vector<1x8x128xf32> to vector<8x128xf32>
    %169 = vector.extract_strided_slice %166 {offsets = [0, 0], sizes = [8, 128], strides = [1, 1]} : vector<8x256xf32> to vector<8x128xf32>
    %170 = arith.addf %168, %169 : vector<8x128xf32>
    %c4 = arith.constant 4 : index
    %c0_60 = arith.constant 0 : index
    %c128_61 = arith.constant 128 : index
    %171 = vector.load %arg1[%c4, %c0_60, %c128_61] : memref<8x8x256xf32, #tpu.memory_space<vmem>>, vector<1x8x128xf32>
    %172 = vector.shape_cast %171 : vector<1x8x128xf32> to vector<8x128xf32>
    %173 = vector.extract_strided_slice %166 {offsets = [0, 128], sizes = [8, 128], strides = [1, 1]} : vector<8x256xf32> to vector<8x128xf32>
    %174 = arith.addf %172, %173 : vector<8x128xf32>
    %175 = arith.negf %170 : vector<8x128xf32>
    %176 = math.exp %175 : vector<8x128xf32>
    %cst_62 = arith.constant 1.000000e+00 : f32
    %177 = vector.broadcast %cst_62 : f32 to vector<8x128xf32>
    %178 = arith.addf %177, %176 : vector<8x128xf32>
    %179 = arith.divf %177, %178 : vector<8x128xf32>
    %180 = vector.extract_strided_slice %179 {offsets = [0, 0], sizes = [8, 32], strides = [1, 1]} : vector<8x128xf32> to vector<8x32xf32>
    %181 = vector.extract_strided_slice %179 {offsets = [0, 32], sizes = [8, 32], strides = [1, 1]} : vector<8x128xf32> to vector<8x32xf32>
    %182 = vector.extract_strided_slice %179 {offsets = [0, 64], sizes = [8, 32], strides = [1, 1]} : vector<8x128xf32> to vector<8x32xf32>
    %cst_63 = arith.constant 2.000000e+00 : f32
    %183 = vector.broadcast %cst_63 : f32 to vector<8x32xf32>
    %184 = arith.mulf %183, %182 : vector<8x32xf32>
    %cst_64 = arith.constant 1.000000e+00 : f32
    %185 = vector.broadcast %cst_64 : f32 to vector<8x32xf32>
    %186 = arith.subf %184, %185 : vector<8x32xf32>
    %187 = vector.extract_strided_slice %179 {offsets = [0, 96], sizes = [8, 32], strides = [1, 1]} : vector<8x128xf32> to vector<8x32xf32>
    %188 = arith.mulf %181, %136 : vector<8x32xf32>
    %189 = arith.mulf %180, %186 : vector<8x32xf32>
    %190 = arith.addf %188, %189 : vector<8x32xf32>
    %191 = math.tanh %190 : vector<8x32xf32>
    %192 = arith.mulf %187, %191 : vector<8x32xf32>
    %193 = arith.negf %174 : vector<8x128xf32>
    %194 = math.exp %193 : vector<8x128xf32>
    %cst_65 = arith.constant 1.000000e+00 : f32
    %195 = vector.broadcast %cst_65 : f32 to vector<8x128xf32>
    %196 = arith.addf %195, %194 : vector<8x128xf32>
    %197 = arith.divf %195, %196 : vector<8x128xf32>
    %198 = vector.extract_strided_slice %197 {offsets = [0, 0], sizes = [8, 32], strides = [1, 1]} : vector<8x128xf32> to vector<8x32xf32>
    %199 = vector.extract_strided_slice %197 {offsets = [0, 32], sizes = [8, 32], strides = [1, 1]} : vector<8x128xf32> to vector<8x32xf32>
    %200 = vector.extract_strided_slice %197 {offsets = [0, 64], sizes = [8, 32], strides = [1, 1]} : vector<8x128xf32> to vector<8x32xf32>
    %cst_66 = arith.constant 2.000000e+00 : f32
    %201 = vector.broadcast %cst_66 : f32 to vector<8x32xf32>
    %202 = arith.mulf %201, %200 : vector<8x32xf32>
    %cst_67 = arith.constant 1.000000e+00 : f32
    %203 = vector.broadcast %cst_67 : f32 to vector<8x32xf32>
    %204 = arith.subf %202, %203 : vector<8x32xf32>
    %205 = vector.extract_strided_slice %197 {offsets = [0, 96], sizes = [8, 32], strides = [1, 1]} : vector<8x128xf32> to vector<8x32xf32>
    %206 = arith.mulf %199, %154 : vector<8x32xf32>
    %207 = arith.mulf %198, %204 : vector<8x32xf32>
    %208 = arith.addf %206, %207 : vector<8x32xf32>
    %209 = math.tanh %208 : vector<8x32xf32>
    %210 = arith.mulf %205, %209 : vector<8x32xf32>
    %c3_68 = arith.constant 3 : index
    %c0_69 = arith.constant 0 : index
    %c0_70 = arith.constant 0 : index
    %211 = vector.load %arg3[%c3_68, %c0_69, %c0_70] : memref<8x8x64xf32, #tpu.memory_space<vmem>>, vector<1x8x32xf32>
    %212 = vector.shape_cast %211 : vector<1x8x32xf32> to vector<8x32xf32>
    %213 = vector.shape_cast %192 : vector<8x32xf32> to vector<1x8x32xf32>
    tpu.vector_store %arg3[%c3_68, %c0_69, %c0_70], %213 {strides = array<i32>} : memref<8x8x64xf32, #tpu.memory_space<vmem>>, vector<1x8x32xf32>,
    %c4_71 = arith.constant 4 : index
    %c0_72 = arith.constant 0 : index
    %c32_73 = arith.constant 32 : index
    %214 = vector.load %arg3[%c4_71, %c0_72, %c32_73] : memref<8x8x64xf32, #tpu.memory_space<vmem>>, vector<1x8x32xf32>
    %215 = vector.shape_cast %214 : vector<1x8x32xf32> to vector<8x32xf32>
    %216 = vector.shape_cast %210 : vector<8x32xf32> to vector<1x8x32xf32>
    tpu.vector_store %arg3[%c4_71, %c0_72, %c32_73], %216 {strides = array<i32>} : memref<8x8x64xf32, #tpu.memory_space<vmem>>, vector<1x8x32xf32>,
    %217 = tpu.concatenate %192, %210 in 1 : vector<8x32xf32>, vector<8x32xf32> -> vector<8x64xf32>
    %218 = arith.truncf %217 : vector<8x64xf32> to vector<8x64xbf16>
    %c0_74 = arith.constant 0 : index
    %c0_75 = arith.constant 0 : index
    %219 = vector.load %arg2[%c0_74, %c0_75] : memref<64x256xbf16, #tpu.memory_space<vmem>>, vector<64x256xbf16>
    %cst_76 = arith.constant dense<0.000000e+00> : vector<8x256xf32>
    %220 = tpu.matmul %218, %219, %cst_76 {dimension_numbers = #tpu.dot_dimension_numbers<[1], [0], [0], [1], [0, 0, 1, 1], [], []>} : vector<8x64xbf16>, vector<64x256xbf16>, vector<8x256xf32> -> vector<8x256xf32>
    %c4_77 = arith.constant 4 : index
    %c0_78 = arith.constant 0 : index
    %c0_79 = arith.constant 0 : index
    %221 = vector.load %arg1[%c4_77, %c0_78, %c0_79] : memref<8x8x256xf32, #tpu.memory_space<vmem>>, vector<1x8x128xf32>
    %222 = vector.shape_cast %221 : vector<1x8x128xf32> to vector<8x128xf32>
    %223 = vector.extract_strided_slice %220 {offsets = [0, 0], sizes = [8, 128], strides = [1, 1]} : vector<8x256xf32> to vector<8x128xf32>
    %224 = arith.addf %222, %223 : vector<8x128xf32>
    %c3_80 = arith.constant 3 : index
    %c0_81 = arith.constant 0 : index
    %c128_82 = arith.constant 128 : index
    %225 = vector.load %arg1[%c3_80, %c0_81, %c128_82] : memref<8x8x256xf32, #tpu.memory_space<vmem>>, vector<1x8x128xf32>
    %226 = vector.shape_cast %225 : vector<1x8x128xf32> to vector<8x128xf32>
    %227 = vector.extract_strided_slice %220 {offsets = [0, 128], sizes = [8, 128], strides = [1, 1]} : vector<8x256xf32> to vector<8x128xf32>
    %228 = arith.addf %226, %227 : vector<8x128xf32>
    %229 = arith.negf %224 : vector<8x128xf32>
    %230 = math.exp %229 : vector<8x128xf32>
    %cst_83 = arith.constant 1.000000e+00 : f32
    %231 = vector.broadcast %cst_83 : f32 to vector<8x128xf32>
    %232 = arith.addf %231, %230 : vector<8x128xf32>
    %233 = arith.divf %231, %232 : vector<8x128xf32>
    %234 = vector.extract_strided_slice %233 {offsets = [0, 0], sizes = [8, 32], strides = [1, 1]} : vector<8x128xf32> to vector<8x32xf32>
    %235 = vector.extract_strided_slice %233 {offsets = [0, 32], sizes = [8, 32], strides = [1, 1]} : vector<8x128xf32> to vector<8x32xf32>
    %236 = vector.extract_strided_slice %233 {offsets = [0, 64], sizes = [8, 32], strides = [1, 1]} : vector<8x128xf32> to vector<8x32xf32>
    %cst_84 = arith.constant 2.000000e+00 : f32
    %237 = vector.broadcast %cst_84 : f32 to vector<8x32xf32>
    %238 = arith.mulf %237, %236 : vector<8x32xf32>
    %cst_85 = arith.constant 1.000000e+00 : f32
    %239 = vector.broadcast %cst_85 : f32 to vector<8x32xf32>
    %240 = arith.subf %238, %239 : vector<8x32xf32>
    %241 = vector.extract_strided_slice %233 {offsets = [0, 96], sizes = [8, 32], strides = [1, 1]} : vector<8x128xf32> to vector<8x32xf32>
    %242 = arith.mulf %235, %190 : vector<8x32xf32>
    %243 = arith.mulf %234, %240 : vector<8x32xf32>
    %244 = arith.addf %242, %243 : vector<8x32xf32>
    %245 = math.tanh %244 : vector<8x32xf32>
    %246 = arith.mulf %241, %245 : vector<8x32xf32>
    %247 = arith.negf %228 : vector<8x128xf32>
    %248 = math.exp %247 : vector<8x128xf32>
    %cst_86 = arith.constant 1.000000e+00 : f32
    %249 = vector.broadcast %cst_86 : f32 to vector<8x128xf32>
    %250 = arith.addf %249, %248 : vector<8x128xf32>
    %251 = arith.divf %249, %250 : vector<8x128xf32>
    %252 = vector.extract_strided_slice %251 {offsets = [0, 0], sizes = [8, 32], strides = [1, 1]} : vector<8x128xf32> to vector<8x32xf32>
    %253 = vector.extract_strided_slice %251 {offsets = [0, 32], sizes = [8, 32], strides = [1, 1]} : vector<8x128xf32> to vector<8x32xf32>
    %254 = vector.extract_strided_slice %251 {offsets = [0, 64], sizes = [8, 32], strides = [1, 1]} : vector<8x128xf32> to vector<8x32xf32>
    %cst_87 = arith.constant 2.000000e+00 : f32
    %255 = vector.broadcast %cst_87 : f32 to vector<8x32xf32>
    %256 = arith.mulf %255, %254 : vector<8x32xf32>
    %cst_88 = arith.constant 1.000000e+00 : f32
    %257 = vector.broadcast %cst_88 : f32 to vector<8x32xf32>
    %258 = arith.subf %256, %257 : vector<8x32xf32>
    %259 = vector.extract_strided_slice %251 {offsets = [0, 96], sizes = [8, 32], strides = [1, 1]} : vector<8x128xf32> to vector<8x32xf32>
    %260 = arith.mulf %253, %208 : vector<8x32xf32>
    %261 = arith.mulf %252, %258 : vector<8x32xf32>
    %262 = arith.addf %260, %261 : vector<8x32xf32>
    %263 = math.tanh %262 : vector<8x32xf32>
    %264 = arith.mulf %259, %263 : vector<8x32xf32>
    %c4_89 = arith.constant 4 : index
    %c0_90 = arith.constant 0 : index
    %c0_91 = arith.constant 0 : index
    %265 = vector.load %arg3[%c4_89, %c0_90, %c0_91] : memref<8x8x64xf32, #tpu.memory_space<vmem>>, vector<1x8x32xf32>
    %266 = vector.shape_cast %265 : vector<1x8x32xf32> to vector<8x32xf32>
    %267 = vector.shape_cast %246 : vector<8x32xf32> to vector<1x8x32xf32>
    tpu.vector_store %arg3[%c4_89, %c0_90, %c0_91], %267 {strides = array<i32>} : memref<8x8x64xf32, #tpu.memory_space<vmem>>, vector<1x8x32xf32>,
    %c3_92 = arith.constant 3 : index
    %c0_93 = arith.constant 0 : index
    %c32_94 = arith.constant 32 : index
    %268 = vector.load %arg3[%c3_92, %c0_93, %c32_94] : memref<8x8x64xf32, #tpu.memory_space<vmem>>, vector<1x8x32xf32>
    %269 = vector.shape_cast %268 : vector<1x8x32xf32> to vector<8x32xf32>
    %270 = vector.shape_cast %264 : vector<8x32xf32> to vector<1x8x32xf32>
    tpu.vector_store %arg3[%c3_92, %c0_93, %c32_94], %270 {strides = array<i32>} : memref<8x8x64xf32, #tpu.memory_space<vmem>>, vector<1x8x32xf32>,
    %271 = tpu.concatenate %246, %264 in 1 : vector<8x32xf32>, vector<8x32xf32> -> vector<8x64xf32>
    %272 = arith.truncf %271 : vector<8x64xf32> to vector<8x64xbf16>
    %c0_95 = arith.constant 0 : index
    %c0_96 = arith.constant 0 : index
    %273 = vector.load %arg2[%c0_95, %c0_96] : memref<64x256xbf16, #tpu.memory_space<vmem>>, vector<64x256xbf16>
    %cst_97 = arith.constant dense<0.000000e+00> : vector<8x256xf32>
    %274 = tpu.matmul %272, %273, %cst_97 {dimension_numbers = #tpu.dot_dimension_numbers<[1], [0], [0], [1], [0, 0, 1, 1], [], []>} : vector<8x64xbf16>, vector<64x256xbf16>, vector<8x256xf32> -> vector<8x256xf32>
    %c5_98 = arith.constant 5 : index
    %c0_99 = arith.constant 0 : index
    %c0_100 = arith.constant 0 : index
    %275 = vector.load %arg1[%c5_98, %c0_99, %c0_100] : memref<8x8x256xf32, #tpu.memory_space<vmem>>, vector<1x8x128xf32>
    %276 = vector.shape_cast %275 : vector<1x8x128xf32> to vector<8x128xf32>
    %277 = vector.extract_strided_slice %274 {offsets = [0, 0], sizes = [8, 128], strides = [1, 1]} : vector<8x256xf32> to vector<8x128xf32>
    %278 = arith.addf %276, %277 : vector<8x128xf32>
    %c2_101 = arith.constant 2 : index
    %c0_102 = arith.constant 0 : index
    %c128_103 = arith.constant 128 : index
    %279 = vector.load %arg1[%c2_101, %c0_102, %c128_103] : memref<8x8x256xf32, #tpu.memory_space<vmem>>, vector<1x8x128xf32>
    %280 = vector.shape_cast %279 : vector<1x8x128xf32> to vector<8x128xf32>
    %281 = vector.extract_strided_slice %274 {offsets = [0, 128], sizes = [8, 128], strides = [1, 1]} : vector<8x256xf32> to vector<8x128xf32>
    %282 = arith.addf %280, %281 : vector<8x128xf32>
    %283 = arith.negf %278 : vector<8x128xf32>
    %284 = math.exp %283 : vector<8x128xf32>
    %cst_104 = arith.constant 1.000000e+00 : f32
    %285 = vector.broadcast %cst_104 : f32 to vector<8x128xf32>
    %286 = arith.addf %285, %284 : vector<8x128xf32>
    %287 = arith.divf %285, %286 : vector<8x128xf32>
    %288 = vector.extract_strided_slice %287 {offsets = [0, 0], sizes = [8, 32], strides = [1, 1]} : vector<8x128xf32> to vector<8x32xf32>
    %289 = vector.extract_strided_slice %287 {offsets = [0, 32], sizes = [8, 32], strides = [1, 1]} : vector<8x128xf32> to vector<8x32xf32>
    %290 = vector.extract_strided_slice %287 {offsets = [0, 64], sizes = [8, 32], strides = [1, 1]} : vector<8x128xf32> to vector<8x32xf32>
    %cst_105 = arith.constant 2.000000e+00 : f32
    %291 = vector.broadcast %cst_105 : f32 to vector<8x32xf32>
    %292 = arith.mulf %291, %290 : vector<8x32xf32>
    %cst_106 = arith.constant 1.000000e+00 : f32
    %293 = vector.broadcast %cst_106 : f32 to vector<8x32xf32>
    %294 = arith.subf %292, %293 : vector<8x32xf32>
    %295 = vector.extract_strided_slice %287 {offsets = [0, 96], sizes = [8, 32], strides = [1, 1]} : vector<8x128xf32> to vector<8x32xf32>
    %296 = arith.mulf %289, %244 : vector<8x32xf32>
    %297 = arith.mulf %288, %294 : vector<8x32xf32>
    %298 = arith.addf %296, %297 : vector<8x32xf32>
    %299 = math.tanh %298 : vector<8x32xf32>
    %300 = arith.mulf %295, %299 : vector<8x32xf32>
    %301 = arith.negf %282 : vector<8x128xf32>
    %302 = math.exp %301 : vector<8x128xf32>
    %cst_107 = arith.constant 1.000000e+00 : f32
    %303 = vector.broadcast %cst_107 : f32 to vector<8x128xf32>
    %304 = arith.addf %303, %302 : vector<8x128xf32>
    %305 = arith.divf %303, %304 : vector<8x128xf32>
    %306 = vector.extract_strided_slice %305 {offsets = [0, 0], sizes = [8, 32], strides = [1, 1]} : vector<8x128xf32> to vector<8x32xf32>
    %307 = vector.extract_strided_slice %305 {offsets = [0, 32], sizes = [8, 32], strides = [1, 1]} : vector<8x128xf32> to vector<8x32xf32>
    %308 = vector.extract_strided_slice %305 {offsets = [0, 64], sizes = [8, 32], strides = [1, 1]} : vector<8x128xf32> to vector<8x32xf32>
    %cst_108 = arith.constant 2.000000e+00 : f32
    %309 = vector.broadcast %cst_108 : f32 to vector<8x32xf32>
    %310 = arith.mulf %309, %308 : vector<8x32xf32>
    %cst_109 = arith.constant 1.000000e+00 : f32
    %311 = vector.broadcast %cst_109 : f32 to vector<8x32xf32>
    %312 = arith.subf %310, %311 : vector<8x32xf32>
    %313 = vector.extract_strided_slice %305 {offsets = [0, 96], sizes = [8, 32], strides = [1, 1]} : vector<8x128xf32> to vector<8x32xf32>
    %314 = arith.mulf %307, %262 : vector<8x32xf32>
    %315 = arith.mulf %306, %312 : vector<8x32xf32>
    %316 = arith.addf %314, %315 : vector<8x32xf32>
    %317 = math.tanh %316 : vector<8x32xf32>
    %318 = arith.mulf %313, %317 : vector<8x32xf32>
    %c5_110 = arith.constant 5 : index
    %c0_111 = arith.constant 0 : index
    %c0_112 = arith.constant 0 : index
    %319 = vector.load %arg3[%c5_110, %c0_111, %c0_112] : memref<8x8x64xf32, #tpu.memory_space<vmem>>, vector<1x8x32xf32>
    %320 = vector.shape_cast %319 : vector<1x8x32xf32> to vector<8x32xf32>
    %321 = vector.shape_cast %300 : vector<8x32xf32> to vector<1x8x32xf32>
    tpu.vector_store %arg3[%c5_110, %c0_111, %c0_112], %321 {strides = array<i32>} : memref<8x8x64xf32, #tpu.memory_space<vmem>>, vector<1x8x32xf32>,
    %c2_113 = arith.constant 2 : index
    %c0_114 = arith.constant 0 : index
    %c32_115 = arith.constant 32 : index
    %322 = vector.load %arg3[%c2_113, %c0_114, %c32_115] : memref<8x8x64xf32, #tpu.memory_space<vmem>>, vector<1x8x32xf32>
    %323 = vector.shape_cast %322 : vector<1x8x32xf32> to vector<8x32xf32>
    %324 = vector.shape_cast %318 : vector<8x32xf32> to vector<1x8x32xf32>
    tpu.vector_store %arg3[%c2_113, %c0_114, %c32_115], %324 {strides = array<i32>} : memref<8x8x64xf32, #tpu.memory_space<vmem>>, vector<1x8x32xf32>,
    %325 = tpu.concatenate %300, %318 in 1 : vector<8x32xf32>, vector<8x32xf32> -> vector<8x64xf32>
    %326 = arith.truncf %325 : vector<8x64xf32> to vector<8x64xbf16>
    %c0_116 = arith.constant 0 : index
    %c0_117 = arith.constant 0 : index
    %327 = vector.load %arg2[%c0_116, %c0_117] : memref<64x256xbf16, #tpu.memory_space<vmem>>, vector<64x256xbf16>
    %cst_118 = arith.constant dense<0.000000e+00> : vector<8x256xf32>
    %328 = tpu.matmul %326, %327, %cst_118 {dimension_numbers = #tpu.dot_dimension_numbers<[1], [0], [0], [1], [0, 0, 1, 1], [], []>} : vector<8x64xbf16>, vector<64x256xbf16>, vector<8x256xf32> -> vector<8x256xf32>
    %c6_119 = arith.constant 6 : index
    %c0_120 = arith.constant 0 : index
    %c0_121 = arith.constant 0 : index
    %329 = vector.load %arg1[%c6_119, %c0_120, %c0_121] : memref<8x8x256xf32, #tpu.memory_space<vmem>>, vector<1x8x128xf32>
    %330 = vector.shape_cast %329 : vector<1x8x128xf32> to vector<8x128xf32>
    %331 = vector.extract_strided_slice %328 {offsets = [0, 0], sizes = [8, 128], strides = [1, 1]} : vector<8x256xf32> to vector<8x128xf32>
    %332 = arith.addf %330, %331 : vector<8x128xf32>
    %c1_122 = arith.constant 1 : index
    %c0_123 = arith.constant 0 : index
    %c128_124 = arith.constant 128 : index
    %333 = vector.load %arg1[%c1_122, %c0_123, %c128_124] : memref<8x8x256xf32, #tpu.memory_space<vmem>>, vector<1x8x128xf32>
    %334 = vector.shape_cast %333 : vector<1x8x128xf32> to vector<8x128xf32>
    %335 = vector.extract_strided_slice %328 {offsets = [0, 128], sizes = [8, 128], strides = [1, 1]} : vector<8x256xf32> to vector<8x128xf32>
    %336 = arith.addf %334, %335 : vector<8x128xf32>
    %337 = arith.negf %332 : vector<8x128xf32>
    %338 = math.exp %337 : vector<8x128xf32>
    %cst_125 = arith.constant 1.000000e+00 : f32
    %339 = vector.broadcast %cst_125 : f32 to vector<8x128xf32>
    %340 = arith.addf %339, %338 : vector<8x128xf32>
    %341 = arith.divf %339, %340 : vector<8x128xf32>
    %342 = vector.extract_strided_slice %341 {offsets = [0, 0], sizes = [8, 32], strides = [1, 1]} : vector<8x128xf32> to vector<8x32xf32>
    %343 = vector.extract_strided_slice %341 {offsets = [0, 32], sizes = [8, 32], strides = [1, 1]} : vector<8x128xf32> to vector<8x32xf32>
    %344 = vector.extract_strided_slice %341 {offsets = [0, 64], sizes = [8, 32], strides = [1, 1]} : vector<8x128xf32> to vector<8x32xf32>
    %cst_126 = arith.constant 2.000000e+00 : f32
    %345 = vector.broadcast %cst_126 : f32 to vector<8x32xf32>
    %346 = arith.mulf %345, %344 : vector<8x32xf32>
    %cst_127 = arith.constant 1.000000e+00 : f32
    %347 = vector.broadcast %cst_127 : f32 to vector<8x32xf32>
    %348 = arith.subf %346, %347 : vector<8x32xf32>
    %349 = vector.extract_strided_slice %341 {offsets = [0, 96], sizes = [8, 32], strides = [1, 1]} : vector<8x128xf32> to vector<8x32xf32>
    %350 = arith.mulf %343, %298 : vector<8x32xf32>
    %351 = arith.mulf %342, %348 : vector<8x32xf32>
    %352 = arith.addf %350, %351 : vector<8x32xf32>
    %353 = math.tanh %352 : vector<8x32xf32>
    %354 = arith.mulf %349, %353 : vector<8x32xf32>
    %355 = arith.negf %336 : vector<8x128xf32>
    %356 = math.exp %355 : vector<8x128xf32>
    %cst_128 = arith.constant 1.000000e+00 : f32
    %357 = vector.broadcast %cst_128 : f32 to vector<8x128xf32>
    %358 = arith.addf %357, %356 : vector<8x128xf32>
    %359 = arith.divf %357, %358 : vector<8x128xf32>
    %360 = vector.extract_strided_slice %359 {offsets = [0, 0], sizes = [8, 32], strides = [1, 1]} : vector<8x128xf32> to vector<8x32xf32>
    %361 = vector.extract_strided_slice %359 {offsets = [0, 32], sizes = [8, 32], strides = [1, 1]} : vector<8x128xf32> to vector<8x32xf32>
    %362 = vector.extract_strided_slice %359 {offsets = [0, 64], sizes = [8, 32], strides = [1, 1]} : vector<8x128xf32> to vector<8x32xf32>
    %cst_129 = arith.constant 2.000000e+00 : f32
    %363 = vector.broadcast %cst_129 : f32 to vector<8x32xf32>
    %364 = arith.mulf %363, %362 : vector<8x32xf32>
    %cst_130 = arith.constant 1.000000e+00 : f32
    %365 = vector.broadcast %cst_130 : f32 to vector<8x32xf32>
    %366 = arith.subf %364, %365 : vector<8x32xf32>
    %367 = vector.extract_strided_slice %359 {offsets = [0, 96], sizes = [8, 32], strides = [1, 1]} : vector<8x128xf32> to vector<8x32xf32>
    %368 = arith.mulf %361, %316 : vector<8x32xf32>
    %369 = arith.mulf %360, %366 : vector<8x32xf32>
    %370 = arith.addf %368, %369 : vector<8x32xf32>
    %371 = math.tanh %370 : vector<8x32xf32>
    %372 = arith.mulf %367, %371 : vector<8x32xf32>
    %c6_131 = arith.constant 6 : index
    %c0_132 = arith.constant 0 : index
    %c0_133 = arith.constant 0 : index
    %373 = vector.load %arg3[%c6_131, %c0_132, %c0_133] : memref<8x8x64xf32, #tpu.memory_space<vmem>>, vector<1x8x32xf32>
    %374 = vector.shape_cast %373 : vector<1x8x32xf32> to vector<8x32xf32>
    %375 = vector.shape_cast %354 : vector<8x32xf32> to vector<1x8x32xf32>
    tpu.vector_store %arg3[%c6_131, %c0_132, %c0_133], %375 {strides = array<i32>} : memref<8x8x64xf32, #tpu.memory_space<vmem>>, vector<1x8x32xf32>,
    %c1_134 = arith.constant 1 : index
    %c0_135 = arith.constant 0 : index
    %c32_136 = arith.constant 32 : index
    %376 = vector.load %arg3[%c1_134, %c0_135, %c32_136] : memref<8x8x64xf32, #tpu.memory_space<vmem>>, vector<1x8x32xf32>
    %377 = vector.shape_cast %376 : vector<1x8x32xf32> to vector<8x32xf32>
    %378 = vector.shape_cast %372 : vector<8x32xf32> to vector<1x8x32xf32>
    tpu.vector_store %arg3[%c1_134, %c0_135, %c32_136], %378 {strides = array<i32>} : memref<8x8x64xf32, #tpu.memory_space<vmem>>, vector<1x8x32xf32>,
    %379 = tpu.concatenate %354, %372 in 1 : vector<8x32xf32>, vector<8x32xf32> -> vector<8x64xf32>
    %380 = arith.truncf %379 : vector<8x64xf32> to vector<8x64xbf16>
    %c0_137 = arith.constant 0 : index
    %c0_138 = arith.constant 0 : index
    %381 = vector.load %arg2[%c0_137, %c0_138] : memref<64x256xbf16, #tpu.memory_space<vmem>>, vector<64x256xbf16>
    %cst_139 = arith.constant dense<0.000000e+00> : vector<8x256xf32>
    %382 = tpu.matmul %380, %381, %cst_139 {dimension_numbers = #tpu.dot_dimension_numbers<[1], [0], [0], [1], [0, 0, 1, 1], [], []>} : vector<8x64xbf16>, vector<64x256xbf16>, vector<8x256xf32> -> vector<8x256xf32>
    %c7_140 = arith.constant 7 : index
    %c0_141 = arith.constant 0 : index
    %c0_142 = arith.constant 0 : index
    %383 = vector.load %arg1[%c7_140, %c0_141, %c0_142] : memref<8x8x256xf32, #tpu.memory_space<vmem>>, vector<1x8x128xf32>
    %384 = vector.shape_cast %383 : vector<1x8x128xf32> to vector<8x128xf32>
    %385 = vector.extract_strided_slice %382 {offsets = [0, 0], sizes = [8, 128], strides = [1, 1]} : vector<8x256xf32> to vector<8x128xf32>
    %386 = arith.addf %384, %385 : vector<8x128xf32>
    %c0_143 = arith.constant 0 : index
    %c0_144 = arith.constant 0 : index
    %c128_145 = arith.constant 128 : index
    %387 = vector.load %arg1[%c0_143, %c0_144, %c128_145] : memref<8x8x256xf32, #tpu.memory_space<vmem>>, vector<1x8x128xf32>
    %388 = vector.shape_cast %387 : vector<1x8x128xf32> to vector<8x128xf32>
    %389 = vector.extract_strided_slice %382 {offsets = [0, 128], sizes = [8, 128], strides = [1, 1]} : vector<8x256xf32> to vector<8x128xf32>
    %390 = arith.addf %388, %389 : vector<8x128xf32>
    %391 = arith.negf %386 : vector<8x128xf32>
    %392 = math.exp %391 : vector<8x128xf32>
    %cst_146 = arith.constant 1.000000e+00 : f32
    %393 = vector.broadcast %cst_146 : f32 to vector<8x128xf32>
    %394 = arith.addf %393, %392 : vector<8x128xf32>
    %395 = arith.divf %393, %394 : vector<8x128xf32>
    %396 = vector.extract_strided_slice %395 {offsets = [0, 0], sizes = [8, 32], strides = [1, 1]} : vector<8x128xf32> to vector<8x32xf32>
    %397 = vector.extract_strided_slice %395 {offsets = [0, 32], sizes = [8, 32], strides = [1, 1]} : vector<8x128xf32> to vector<8x32xf32>
    %398 = vector.extract_strided_slice %395 {offsets = [0, 64], sizes = [8, 32], strides = [1, 1]} : vector<8x128xf32> to vector<8x32xf32>
    %cst_147 = arith.constant 2.000000e+00 : f32
    %399 = vector.broadcast %cst_147 : f32 to vector<8x32xf32>
    %400 = arith.mulf %399, %398 : vector<8x32xf32>
    %cst_148 = arith.constant 1.000000e+00 : f32
    %401 = vector.broadcast %cst_148 : f32 to vector<8x32xf32>
    %402 = arith.subf %400, %401 : vector<8x32xf32>
    %403 = vector.extract_strided_slice %395 {offsets = [0, 96], sizes = [8, 32], strides = [1, 1]} : vector<8x128xf32> to vector<8x32xf32>
    %404 = arith.mulf %397, %352 : vector<8x32xf32>
    %405 = arith.mulf %396, %402 : vector<8x32xf32>
    %406 = arith.addf %404, %405 : vector<8x32xf32>
    %407 = math.tanh %406 : vector<8x32xf32>
    %408 = arith.mulf %403, %407 : vector<8x32xf32>
    %409 = arith.negf %390 : vector<8x128xf32>
    %410 = math.exp %409 : vector<8x128xf32>
    %cst_149 = arith.constant 1.000000e+00 : f32
    %411 = vector.broadcast %cst_149 : f32 to vector<8x128xf32>
    %412 = arith.addf %411, %410 : vector<8x128xf32>
    %413 = arith.divf %411, %412 : vector<8x128xf32>
    %414 = vector.extract_strided_slice %413 {offsets = [0, 0], sizes = [8, 32], strides = [1, 1]} : vector<8x128xf32> to vector<8x32xf32>
    %415 = vector.extract_strided_slice %413 {offsets = [0, 32], sizes = [8, 32], strides = [1, 1]} : vector<8x128xf32> to vector<8x32xf32>
    %416 = vector.extract_strided_slice %413 {offsets = [0, 64], sizes = [8, 32], strides = [1, 1]} : vector<8x128xf32> to vector<8x32xf32>
    %cst_150 = arith.constant 2.000000e+00 : f32
    %417 = vector.broadcast %cst_150 : f32 to vector<8x32xf32>
    %418 = arith.mulf %417, %416 : vector<8x32xf32>
    %cst_151 = arith.constant 1.000000e+00 : f32
    %419 = vector.broadcast %cst_151 : f32 to vector<8x32xf32>
    %420 = arith.subf %418, %419 : vector<8x32xf32>
    %421 = vector.extract_strided_slice %413 {offsets = [0, 96], sizes = [8, 32], strides = [1, 1]} : vector<8x128xf32> to vector<8x32xf32>
    %422 = arith.mulf %415, %370 : vector<8x32xf32>
    %423 = arith.mulf %414, %420 : vector<8x32xf32>
    %424 = arith.addf %422, %423 : vector<8x32xf32>
    %425 = math.tanh %424 : vector<8x32xf32>
    %426 = arith.mulf %421, %425 : vector<8x32xf32>
    %c7_152 = arith.constant 7 : index
    %c0_153 = arith.constant 0 : index
    %c0_154 = arith.constant 0 : index
    %427 = vector.load %arg3[%c7_152, %c0_153, %c0_154] : memref<8x8x64xf32, #tpu.memory_space<vmem>>, vector<1x8x32xf32>
    %428 = vector.shape_cast %427 : vector<1x8x32xf32> to vector<8x32xf32>
    %429 = vector.shape_cast %408 : vector<8x32xf32> to vector<1x8x32xf32>
    tpu.vector_store %arg3[%c7_152, %c0_153, %c0_154], %429 {strides = array<i32>} : memref<8x8x64xf32, #tpu.memory_space<vmem>>, vector<1x8x32xf32>,
    %c0_155 = arith.constant 0 : index
    %c0_156 = arith.constant 0 : index
    %c32_157 = arith.constant 32 : index
    %430 = vector.load %arg3[%c0_155, %c0_156, %c32_157] : memref<8x8x64xf32, #tpu.memory_space<vmem>>, vector<1x8x32xf32>
    %431 = vector.shape_cast %430 : vector<1x8x32xf32> to vector<8x32xf32>
    %432 = vector.shape_cast %426 : vector<8x32xf32> to vector<1x8x32xf32>
    tpu.vector_store %arg3[%c0_155, %c0_156, %c32_157], %432 {strides = array<i32>} : memref<8x8x64xf32, #tpu.memory_space<vmem>>, vector<1x8x32xf32>,
    return
  }
  func.func @transform_0(%arg0: i32) -> (i32, i32, i32) {
    %c0_i32 = arith.constant 0 : i32
    %c0_i32_0 = arith.constant 0 : i32
    %c0_i32_1 = arith.constant 0 : i32
    %c0_i32_2 = arith.constant 0 : i32
    return %c0_i32, %c0_i32_0, %c0_i32_1 : i32, i32, i32
  }
  func.func @transform_1(%arg0: i32) -> (i32, i32) {
    %c0_i32 = arith.constant 0 : i32
    %c0_i32_0 = arith.constant 0 : i32
    %c0_i32_1 = arith.constant 0 : i32
    return %c0_i32, %c0_i32_0 : i32, i32
  }
  func.func @transform_2(%arg0: i32) -> (i32, i32, i32) {
    %c0_i32 = arith.constant 0 : i32
    %c0_i32_0 = arith.constant 0 : i32
    %c0_i32_1 = arith.constant 0 : i32
    %c0_i32_2 = arith.constant 0 : i32
    return %c0_i32, %c0_i32_0, %c0_i32_1 : i32, i32, i32
  }
}

</mosaic_0001>

<llo_original>
// kernel: lstm_model_forward.2
$region0: #{lstm_model_forward.2}
  #allocation0 [shape = 'u32[]', space=smem, size = 0x4, offset = 0x4, fixed_abs, tag = 'smem constant byte address 0x4 - core index']
  #allocation1 [shape = 'u32[144,128]{1,0:T(1,128)}', space=vmem, size = 0x12000, scoped, tag = 'internal scratch']
  %s0 = inlined_call_operand.hbm [shape: f32[8,8,256], index: 0, kind: input, shape index: {}]
  %s1 = inlined_call_operand.hbm [shape: bf16[64,256], index: 1, kind: input, shape index: {}]
  %s2 = inlined_call_operand.hbm [shape: f32[8,8,64], index: 2, kind: output, shape index: {}]
  %s3 = sld [smem:[#allocation0]]
  $region26: #{lstm_model_forward.2} parent=0
    _
  %s5 = ssub.s32 1, %s3
  %s6 = scalar_select 0, %s5, %s3
  $region1: #{lstm_model_forward.2} parent=0
    #allocation2 [shape = 'u8[65536]{0}', space=vmem, size = 0x10000, scoped, tag = 'input window, operand 0, single buffered']
    #allocation3 [shape = 's32[1]{0}', space=sflag, size = 0x4, scoped, tag = 'scoped memory for lstm_model_forward.2']
    #allocation4 [shape = 's32[1]{0}', space=sflag, size = 0x4, scoped, tag = 'scoped memory for lstm_model_forward.2']
    #allocation5 [shape = 'u8[32768]{0}', space=vmem, size = 0x8000, scoped, tag = 'input window, operand 1, single buffered']
    #allocation6 [shape = 's32[1]{0}', space=sflag, size = 0x4, scoped, tag = 'scoped memory for lstm_model_forward.2']
    #allocation7 [shape = 'u8[32768]{0}', space=vmem, size = 0x8000, scoped, tag = 'output window, operand 0, single buffered']
    %7 = vsyncpa [#allocation3], 0
    %8 = vsyncpa [#allocation6], 0
    %9 = vsyncpa [#allocation4], 0
    // Predicated region
    $region2: #{lstm_model_forward.2} parent=1 // pred_check
      _
    $region3: #{lstm_model_forward.2} parent=1 // pred_check_branch
      %11 = sbr.rel (0) target = $region5
    $region4: #{lstm_model_forward.2} parent=1 // pred_region
      %s13 = ssub.s32 2048, 2048
      %14 = vsyncadd [#allocation3], %s13
      %s15 = sshll.u32 [#allocation2], 4
      %s16 = int_to_ptr.vmem [resolvable:$true] %s15
      %21 = dma.hbm_to_vmem [thread:$0]  %s0, 2048, %s16, [#allocation3], 256, 256, 16
    $region5: #{lstm_model_forward.2} parent=1 // pred_fallthru
      _
    // Predicated region
    $region6: #{lstm_model_forward.2} parent=1 // pred_check
      _
    $region7: #{lstm_model_forward.2} parent=1 // pred_check_branch
      %23 = sbr.rel (0) target = $region9
    $region8: #{lstm_model_forward.2} parent=1 // pred_region
      %s25 = ssub.s32 1024, 1024
      %26 = vsyncadd [#allocation6], %s25
      %s27 = sshll.u32 [#allocation5], 4
      %s28 = int_to_ptr.vmem [resolvable:$true] %s27
      %33 = dma.hbm_to_vmem [thread:$0]  %s1, 1024, %s28, [#allocation6], 128, 128, 8
    $region9: #{lstm_model_forward.2} parent=1 // pred_fallthru
      _
    // Predicated region
    $region10: #{lstm_model_forward.2} parent=1 // pred_check
      _
    $region11: #{lstm_model_forward.2} parent=1 // pred_check_branch
      %35 = sbr.rel (0) target = $region13
    $region12: #{lstm_model_forward.2} parent=1 // pred_region
      %36 = dma.done [#allocation3], 2048
    $region13: #{lstm_model_forward.2} parent=1 // pred_fallthru
      _
    // Predicated region
    $region14: #{lstm_model_forward.2} parent=1 // pred_check
      _
    $region15: #{lstm_model_forward.2} parent=1 // pred_check_branch
      %38 = sbr.rel (0) target = $region17
    $region16: #{lstm_model_forward.2} parent=1 // pred_region
      %39 = dma.done [#allocation6], 1024
    $region17: #{lstm_model_forward.2} parent=1 // pred_fallthru
      _
    %v41 = vpack.c.bf16 0.0, 0.0
    %v42 = vld [vmem:[#allocation5] sm:$0xff]
    %v43 = vld [vmem:[#allocation5 + $0x8] sm:$0xff]
    %v44 = vld [vmem:[#allocation5 + $0x10] sm:$0xff]
    %v45 = vld [vmem:[#allocation5 + $0x18] sm:$0xff]
    %v46 = vld [vmem:[#allocation5 + $0x20] sm:$0xff]
    %v47 = vld [vmem:[#allocation5 + $0x28] sm:$0xff]
    %v48 = vld [vmem:[#allocation5 + $0x30] sm:$0xff]
    %v49 = vld [vmem:[#allocation5 + $0x38] sm:$0xff]
    %v58 = vunpack.c.l.b16 %v42
    %v59 = vunpack.c.h.b16 %v42
    %v60 = vunpack.c.l.b16 %v43
    %v61 = vunpack.c.h.b16 %v43
    %v62 = vunpack.c.l.b16 %v44
    %v63 = vunpack.c.h.b16 %v44
    %v64 = vunpack.c.l.b16 %v45
    %v65 = vunpack.c.h.b16 %v45
    %v66 = vunpack.c.l.b16 %v46
    %v67 = vunpack.c.h.b16 %v46
    %v68 = vunpack.c.l.b16 %v47
    %v69 = vunpack.c.h.b16 %v47
    %v70 = vunpack.c.l.b16 %v48
    %v71 = vunpack.c.h.b16 %v48
    %v72 = vunpack.c.l.b16 %v49
    %v73 = vunpack.c.h.b16 %v49
    %v74 = vpack.c.b16 %v60, %v58
    %v75 = vpack.c.b16 %v61, %v59
    %v76 = vpack.c.b16 %v64, %v62
    %v77 = vpack.c.b16 %v65, %v63
    %v78 = vpack.c.b16 %v68, %v66
    %v79 = vpack.c.b16 %v69, %v67
    %v80 = vpack.c.b16 %v72, %v70
    %v81 = vpack.c.b16 %v73, %v71
    %vm90 = vcmask 523264
    %v92 = vsel %vm90, %v41, 0
    %94 = vmatprep.subr.bf16.mxu0 %v75
    %95 = vmatpush1.bf16.msra.mxu0 %v74
    %96 = vmatprep.subr.bf16.mxu0 %v77
    %97 = vmatpush1.bf16.msra.mxu0 %v76
    %98 = vmatprep.subr.bf16.mxu0 %v79
    %99 = vmatpush1.bf16.msra.mxu0 %v78
    %100 = vmatprep.subr.bf16.mxu0 %v81
    %101 = vmatpush1.bf16.msra.mxu0 %v80
    %102 = vmatprep.subr.bf16.mxu0 0
    %103 = vmatpush1.bf16.msra.mxu0 0
    %104 = vmatprep.subr.bf16.mxu0 0
    %105 = vmatpush1.bf16.msra.mxu0 0
    %106 = vmatprep.subr.bf16.mxu0 0
    %107 = vmatpush1.bf16.msra.mxu0 0
    %108 = vmatprep.subr.bf16.mxu0 0
    %109 = vmatpush1.bf16.msra.mxu0 0
    %110 = vmatprep.subr.bf16.mxu0 0
    %111 = vmatpush1.bf16.msra.mxu0 0
    %112 = vmatprep.subr.bf16.mxu0 0
    %113 = vmatpush1.bf16.msra.mxu0 0
    %114 = vmatprep.subr.bf16.mxu0 0
    %115 = vmatpush1.bf16.msra.mxu0 0
    %116 = vmatprep.subr.bf16.mxu0 0
    %117 = vmatpush1.bf16.msra.mxu0 0
    %118 = vmatprep.subr.bf16.mxu0 0
    %119 = vmatpush1.bf16.msra.mxu0 0
    %120 = vmatprep.subr.bf16.mxu0 0
    %121 = vmatpush1.bf16.msra.mxu0 0
    %122 = vmatprep.subr.bf16.mxu0 0
    %123 = vmatpush1.bf16.msra.mxu0 0
    %124 = vmatprep.subr.bf16.mxu0 0
    %125 = vmatpush1.bf16.msra.mxu0 0
    %126 = vmatprep.mubr.bf16.mxu0 0
    %127 = vmatmul.mubr.bf16.gmra.mrb[0].mxu0 %v92
    %v128 = vpop.f32.mrb[0].mxu0
    %v129 = vadd.f32 0.0, %v128
    %v130 = vpop.f32.mrb[0].mxu0
    %v131 = vadd.f32 0.0, %v130
    %v132 = vpop.f32.mrb[0].mxu0
    %v133 = vpop.f32.mrb[0].mxu0
    %134 = vdwg.mxu0
    %v135 = vld [vmem:[#allocation2] sm:$0xff]
    %v136 = vadd.f32 %v135, %v129
    %s137 = scalar_lea.vmem [#allocation2], 112
    %v138 = vld [vmem:[%s137 + $0x8] sm:$0xff]
    %v139 = vadd.f32 %v138, %v131
    %v140 = vxor.u32 %v136, 2147483648
    %v141 = vmul.f32 %v140, 1.442695
    %v142 = vpow.pop %v141
    %v143 = vadd.f32 %v142, 1.0
    %v144 = vrcp.pop %v143
    %v145 = vmul.f32 1.0, %v144
    %v146 = vmul.f32 %v145, 2.0
    %v147 = vsub.f32 %v146, 1.0
    %v148 = vmul.f32 %v145, 0.0
    %150 = vrot.lane.b32.xlu0 %v147, 64
    %v151 = vpop.permute.xlu0 %150
    %v153 = vmul.f32 %v145, %v151
    %155 = vrot.lane.b32.xlu0 %v153, 32
    %v156 = vpop.permute.xlu0 %155
    %v158 = vadd.f32 %v148, %v156
    %v159 = vtanh.pop %v158
    %161 = vrot.lane.b32.xlu0 %v159, 64
    %v162 = vpop.permute.xlu0 %161
    %v164 = vmul.f32 %v145, %v162
    %v165 = vxor.u32 %v139, 2147483648
    %v166 = vmul.f32 %v165, 1.442695
    %v167 = vpow.pop %v166
    %v168 = vadd.f32 %v167, 1.0
    %v169 = vrcp.pop %v168
    %v170 = vmul.f32 1.0, %v169
    %v171 = vmul.f32 %v170, 2.0
    %v172 = vsub.f32 %v171, 1.0
    %v173 = vmul.f32 %v170, 0.0
    %175 = vrot.lane.b32.xlu0 %v172, 64
    %v176 = vpop.permute.xlu0 %175
    %v178 = vmul.f32 %v170, %v176
    %180 = vrot.lane.b32.xlu0 %v178, 32
    %v181 = vpop.permute.xlu0 %180
    %v183 = vadd.f32 %v173, %v181
    %v184 = vtanh.pop %v183
    %186 = vrot.lane.b32.xlu0 %v184, 64
    %v187 = vpop.permute.xlu0 %186
    %v189 = vmul.f32 %v170, %v187
    %191 = vrot.lane.b32.xlu0 %v164, 32
    %v192 = vpop.permute.xlu0 %191
    %vm194 = vcmask 261120
    %195 = vst.msk [vmem:[#allocation7] sm:$0xff] %vm194, %v192
    %197 = vrot.lane.b32.xlu0 %v189, 64
    %v198 = vpop.permute.xlu0 %197
    %s200 = scalar_lea.vmem [#allocation7], 56
    %vm201 = vcmask 523520
    %202 = vst.msk [vmem:[%s200] sm:$0xff] %vm201, %v198
    %v203 = vsel %vm194, %v192, %v198
    %v204 = vpack.c.bf16 %v203, %v203
    %v205 = vld [vmem:[#allocation5] sm:$0xff]
    %v206 = vld [vmem:[#allocation5 + $0x8] sm:$0xff]
    %v207 = vld [vmem:[#allocation5 + $0x10] sm:$0xff]
    %v208 = vld [vmem:[#allocation5 + $0x18] sm:$0xff]
    %v209 = vld [vmem:[#allocation5 + $0x20] sm:$0xff]
    %v210 = vld [vmem:[#allocation5 + $0x28] sm:$0xff]
    %v211 = vld [vmem:[#allocation5 + $0x30] sm:$0xff]
    %v212 = vld [vmem:[#allocation5 + $0x38] sm:$0xff]
    %v221 = vunpack.c.l.b16 %v205
    %v222 = vunpack.c.h.b16 %v205
    %v223 = vunpack.c.l.b16 %v206
    %v224 = vunpack.c.h.b16 %v206
    %v225 = vunpack.c.l.b16 %v207
    %v226 = vunpack.c.h.b16 %v207
    %v227 = vunpack.c.l.b16 %v208
    %v228 = vunpack.c.h.b16 %v208
    %v229 = vunpack.c.l.b16 %v209
    %v230 = vunpack.c.h.b16 %v209
    %v231 = vunpack.c.l.b16 %v210
    %v232 = vunpack.c.h.b16 %v210
    %v233 = vunpack.c.l.b16 %v211
    %v234 = vunpack.c.h.b16 %v211
    %v235 = vunpack.c.l.b16 %v212
    %v236 = vunpack.c.h.b16 %v212
    %v237 = vpack.c.b16 %v223, %v221
    %v238 = vpack.c.b16 %v224, %v222
    %v239 = vpack.c.b16 %v227, %v225
    %v240 = vpack.c.b16 %v228, %v226
    %v241 = vpack.c.b16 %v231, %v229
    %v242 = vpack.c.b16 %v232, %v230
    %v243 = vpack.c.b16 %v235, %v233
    %v244 = vpack.c.b16 %v236, %v234
    %v254 = vsel %vm90, %v204, 0
    %256 = vmatprep.subr.bf16.mxu0 %v238
    %257 = vmatpush1.bf16.msra.mxu0 %v237
    %258 = vmatprep.subr.bf16.mxu0 %v240
    %259 = vmatpush1.bf16.msra.mxu0 %v239
    %260 = vmatprep.subr.bf16.mxu0 %v242
    %261 = vmatpush1.bf16.msra.mxu0 %v241
    %262 = vmatprep.subr.bf16.mxu0 %v244
    %263 = vmatpush1.bf16.msra.mxu0 %v243
    %264 = vmatprep.subr.bf16.mxu0 0
    %265 = vmatpush1.bf16.msra.mxu0 0
    %266 = vmatprep.subr.bf16.mxu0 0
    %267 = vmatpush1.bf16.msra.mxu0 0
    %268 = vmatprep.subr.bf16.mxu0 0
    %269 = vmatpush1.bf16.msra.mxu0 0
    %270 = vmatprep.subr.bf16.mxu0 0
    %271 = vmatpush1.bf16.msra.mxu0 0
    %272 = vmatprep.subr.bf16.mxu0 0
    %273 = vmatpush1.bf16.msra.mxu0 0
    %274 = vmatprep.subr.bf16.mxu0 0
    %275 = vmatpush1.bf16.msra.mxu0 0
    %276 = vmatprep.subr.bf16.mxu0 0
    %277 = vmatpush1.bf16.msra.mxu0 0
    %278 = vmatprep.subr.bf16.mxu0 0
    %279 = vmatpush1.bf16.msra.mxu0 0
    %280 = vmatprep.subr.bf16.mxu0 0
    %281 = vmatpush1.bf16.msra.mxu0 0
    %282 = vmatprep.subr.bf16.mxu0 0
    %283 = vmatpush1.bf16.msra.mxu0 0
    %284 = vmatprep.subr.bf16.mxu0 0
    %285 = vmatpush1.bf16.msra.mxu0 0
    %286 = vmatprep.subr.bf16.mxu0 0
    %287 = vmatpush1.bf16.msra.mxu0 0
    %288 = vmatprep.mubr.bf16.mxu0 0
    %289 = vmatmul.mubr.bf16.gmra.mrb[0].mxu0 %v254
    %v290 = vpop.f32.mrb[0].mxu0
    %v291 = vadd.f32 0.0, %v290
    %v292 = vpop.f32.mrb[0].mxu0
    %v293 = vadd.f32 0.0, %v292
    %v294 = vpop.f32.mrb[0].mxu0
    %v295 = vpop.f32.mrb[0].mxu0
    %296 = vdwg.mxu0
    %s297 = scalar_lea.vmem [#allocation2], 16
    %v298 = vld [vmem:[%s297] sm:$0xff]
    %v299 = vadd.f32 %v298, %v291
    %s300 = scalar_lea.vmem [#allocation2], 96
    %v301 = vld [vmem:[%s300 + $0x8] sm:$0xff]
    %v302 = vadd.f32 %v301, %v293
    %v303 = vxor.u32 %v299, 2147483648
    %v304 = vmul.f32 %v303, 1.442695
    %v305 = vpow.pop %v304
    %v306 = vadd.f32 %v305, 1.0
    %v307 = vrcp.pop %v306
    %v308 = vmul.f32 1.0, %v307
    %v309 = vmul.f32 %v308, 2.0
    %v310 = vsub.f32 %v309, 1.0
    %v311 = vmul.f32 %v308, %v158
    %313 = vrot.lane.b32.xlu0 %v310, 64
    %v314 = vpop.permute.xlu0 %313
    %v316 = vmul.f32 %v308, %v314
    %318 = vrot.lane.b32.xlu0 %v316, 32
    %v319 = vpop.permute.xlu0 %318
    %v321 = vadd.f32 %v311, %v319
    %v322 = vtanh.pop %v321
    %324 = vrot.lane.b32.xlu0 %v322, 64
    %v325 = vpop.permute.xlu0 %324
    %v327 = vmul.f32 %v308, %v325
    %v328 = vxor.u32 %v302, 2147483648
    %v329 = vmul.f32 %v328, 1.442695
    %v330 = vpow.pop %v329
    %v331 = vadd.f32 %v330, 1.0
    %v332 = vrcp.pop %v331
    %v333 = vmul.f32 1.0, %v332
    %v334 = vmul.f32 %v333, 2.0
    %v335 = vsub.f32 %v334, 1.0
    %v336 = vmul.f32 %v333, %v183
    %338 = vrot.lane.b32.xlu0 %v335, 64
    %v339 = vpop.permute.xlu0 %338
    %v341 = vmul.f32 %v333, %v339
    %343 = vrot.lane.b32.xlu0 %v341, 32
    %v344 = vpop.permute.xlu0 %343
    %v346 = vadd.f32 %v336, %v344
    %v347 = vtanh.pop %v346
    %349 = vrot.lane.b32.xlu0 %v347, 64
    %v350 = vpop.permute.xlu0 %349
    %v352 = vmul.f32 %v333, %v350
    %354 = vrot.lane.b32.xlu0 %v327, 32
    %v355 = vpop.permute.xlu0 %354
    %s357 = scalar_lea.vmem [#allocation7], 8
    %358 = vst.msk [vmem:[%s357] sm:$0xff] %vm194, %v355
    %360 = vrot.lane.b32.xlu0 %v352, 64
    %v361 = vpop.permute.xlu0 %360
    %s363 = scalar_lea.vmem [#allocation7], 48
    %364 = vst.msk [vmem:[%s363] sm:$0xff] %vm201, %v361
    %v365 = vsel %vm194, %v355, %v361
    %v366 = vpack.c.bf16 %v365, %v365
    %v367 = vld [vmem:[#allocation5] sm:$0xff]
    %v368 = vld [vmem:[#allocation5 + $0x8] sm:$0xff]
    %v369 = vld [vmem:[#allocation5 + $0x10] sm:$0xff]
    %v370 = vld [vmem:[#allocation5 + $0x18] sm:$0xff]
    %v371 = vld [vmem:[#allocation5 + $0x20] sm:$0xff]
    %v372 = vld [vmem:[#allocation5 + $0x28] sm:$0xff]
    %v373 = vld [vmem:[#allocation5 + $0x30] sm:$0xff]
    %v374 = vld [vmem:[#allocation5 + $0x38] sm:$0xff]
    %v383 = vunpack.c.l.b16 %v367
    %v384 = vunpack.c.h.b16 %v367
    %v385 = vunpack.c.l.b16 %v368
    %v386 = vunpack.c.h.b16 %v368
    %v387 = vunpack.c.l.b16 %v369
    %v388 = vunpack.c.h.b16 %v369
    %v389 = vunpack.c.l.b16 %v370
    %v390 = vunpack.c.h.b16 %v370
    %v391 = vunpack.c.l.b16 %v371
    %v392 = vunpack.c.h.b16 %v371
    %v393 = vunpack.c.l.b16 %v372
    %v394 = vunpack.c.h.b16 %v372
    %v395 = vunpack.c.l.b16 %v373
    %v396 = vunpack.c.h.b16 %v373
    %v397 = vunpack.c.l.b16 %v374
    %v398 = vunpack.c.h.b16 %v374
    %v399 = vpack.c.b16 %v385, %v383
    %v400 = vpack.c.b16 %v386, %v384
    %v401 = vpack.c.b16 %v389, %v387
    %v402 = vpack.c.b16 %v390, %v388
    %v403 = vpack.c.b16 %v393, %v391
    %v404 = vpack.c.b16 %v394, %v392
    %v405 = vpack.c.b16 %v397, %v395
    %v406 = vpack.c.b16 %v398, %v396
    %v416 = vsel %vm90, %v366, 0
    %418 = vmatprep.subr.bf16.mxu0 %v400
    %419 = vmatpush1.bf16.msra.mxu0 %v399
    %420 = vmatprep.subr.bf16.mxu0 %v402
    %421 = vmatpush1.bf16.msra.mxu0 %v401
    %422 = vmatprep.subr.bf16.mxu0 %v404
    %423 = vmatpush1.bf16.msra.mxu0 %v403
    %424 = vmatprep.subr.bf16.mxu0 %v406
    %425 = vmatpush1.bf16.msra.mxu0 %v405
    %426 = vmatprep.subr.bf16.mxu0 0
    %427 = vmatpush1.bf16.msra.mxu0 0
    %428 = vmatprep.subr.bf16.mxu0 0
    %429 = vmatpush1.bf16.msra.mxu0 0
    %430 = vmatprep.subr.bf16.mxu0 0
    %431 = vmatpush1.bf16.msra.mxu0 0
    %432 = vmatprep.subr.bf16.mxu0 0
    %433 = vmatpush1.bf16.msra.mxu0 0
    %434 = vmatprep.subr.bf16.mxu0 0
    %435 = vmatpush1.bf16.msra.mxu0 0
    %436 = vmatprep.subr.bf16.mxu0 0
    %437 = vmatpush1.bf16.msra.mxu0 0
    %438 = vmatprep.subr.bf16.mxu0 0
    %439 = vmatpush1.bf16.msra.mxu0 0
    %440 = vmatprep.subr.bf16.mxu0 0
    %441 = vmatpush1.bf16.msra.mxu0 0
    %442 = vmatprep.subr.bf16.mxu0 0
    %443 = vmatpush1.bf16.msra.mxu0 0
    %444 = vmatprep.subr.bf16.mxu0 0
    %445 = vmatpush1.bf16.msra.mxu0 0
    %446 = vmatprep.subr.bf16.mxu0 0
    %447 = vmatpush1.bf16.msra.mxu0 0
    %448 = vmatprep.subr.bf16.mxu0 0
    %449 = vmatpush1.bf16.msra.mxu0 0
    %450 = vmatprep.mubr.bf16.mxu0 0
    %451 = vmatmul.mubr.bf16.gmra.mrb[0].mxu0 %v416
    %v452 = vpop.f32.mrb[0].mxu0
    %v453 = vadd.f32 0.0, %v452
    %v454 = vpop.f32.mrb[0].mxu0
    %v455 = vadd.f32 0.0, %v454
    %v456 = vpop.f32.mrb[0].mxu0
    %v457 = vpop.f32.mrb[0].mxu0
    %458 = vdwg.mxu0
    %s459 = scalar_lea.vmem [#allocation2], 32
    %v460 = vld [vmem:[%s459] sm:$0xff]
    %v461 = vadd.f32 %v460, %v453
    %s462 = scalar_lea.vmem [#allocation2], 80
    %v463 = vld [vmem:[%s462 + $0x8] sm:$0xff]
    %v464 = vadd.f32 %v463, %v455
    %v465 = vxor.u32 %v461, 2147483648
    %v466 = vmul.f32 %v465, 1.442695
    %v467 = vpow.pop %v466
    %v468 = vadd.f32 %v467, 1.0
    %v469 = vrcp.pop %v468
    %v470 = vmul.f32 1.0, %v469
    %v471 = vmul.f32 %v470, 2.0
    %v472 = vsub.f32 %v471, 1.0
    %v473 = vmul.f32 %v470, %v321
    %475 = vrot.lane.b32.xlu0 %v472, 64
    %v476 = vpop.permute.xlu0 %475
    %v478 = vmul.f32 %v470, %v476
    %480 = vrot.lane.b32.xlu0 %v478, 32
    %v481 = vpop.permute.xlu0 %480
    %v483 = vadd.f32 %v473, %v481
    %v484 = vtanh.pop %v483
    %486 = vrot.lane.b32.xlu0 %v484, 64
    %v487 = vpop.permute.xlu0 %486
    %v489 = vmul.f32 %v470, %v487
    %v490 = vxor.u32 %v464, 2147483648
    %v491 = vmul.f32 %v490, 1.442695
    %v492 = vpow.pop %v491
    %v493 = vadd.f32 %v492, 1.0
    %v494 = vrcp.pop %v493
    %v495 = vmul.f32 1.0, %v494
    %v496 = vmul.f32 %v495, 2.0
    %v497 = vsub.f32 %v496, 1.0
    %v498 = vmul.f32 %v495, %v346
    %500 = vrot.lane.b32.xlu0 %v497, 64
    %v501 = vpop.permute.xlu0 %500
    %v503 = vmul.f32 %v495, %v501
    %505 = vrot.lane.b32.xlu0 %v503, 32
    %v506 = vpop.permute.xlu0 %505
    %v508 = vadd.f32 %v498, %v506
    %v509 = vtanh.pop %v508
    %511 = vrot.lane.b32.xlu0 %v509, 64
    %v512 = vpop.permute.xlu0 %511
    %v514 = vmul.f32 %v495, %v512
    %516 = vrot.lane.b32.xlu0 %v489, 32
    %v517 = vpop.permute.xlu0 %516
    %s519 = scalar_lea.vmem [#allocation7], 16
    %520 = vst.msk [vmem:[%s519] sm:$0xff] %vm194, %v517
    %522 = vrot.lane.b32.xlu0 %v514, 64
    %v523 = vpop.permute.xlu0 %522
    %s525 = scalar_lea.vmem [#allocation7], 40
    %526 = vst.msk [vmem:[%s525] sm:$0xff] %vm201, %v523
    %v527 = vsel %vm194, %v517, %v523
    %v528 = vpack.c.bf16 %v527, %v527
    %v529 = vld [vmem:[#allocation5] sm:$0xff]
    %v530 = vld [vmem:[#allocation5 + $0x8] sm:$0xff]
    %v531 = vld [vmem:[#allocation5 + $0x10] sm:$0xff]
    %v532 = vld [vmem:[#allocation5 + $0x18] sm:$0xff]
    %v533 = vld [vmem:[#allocation5 + $0x20] sm:$0xff]
    %v534 = vld [vmem:[#allocation5 + $0x28] sm:$0xff]
    %v535 = vld [vmem:[#allocation5 + $0x30] sm:$0xff]
    %v536 = vld [vmem:[#allocation5 + $0x38] sm:$0xff]
    %v545 = vunpack.c.l.b16 %v529
    %v546 = vunpack.c.h.b16 %v529
    %v547 = vunpack.c.l.b16 %v530
    %v548 = vunpack.c.h.b16 %v530
    %v549 = vunpack.c.l.b16 %v531
    %v550 = vunpack.c.h.b16 %v531
    %v551 = vunpack.c.l.b16 %v532
    %v552 = vunpack.c.h.b16 %v532
    %v553 = vunpack.c.l.b16 %v533
    %v554 = vunpack.c.h.b16 %v533
    %v555 = vunpack.c.l.b16 %v534
    %v556 = vunpack.c.h.b16 %v534
    %v557 = vunpack.c.l.b16 %v535
    %v558 = vunpack.c.h.b16 %v535
    %v559 = vunpack.c.l.b16 %v536
    %v560 = vunpack.c.h.b16 %v536
    %v561 = vpack.c.b16 %v547, %v545
    %v562 = vpack.c.b16 %v548, %v546
    %v563 = vpack.c.b16 %v551, %v549
    %v564 = vpack.c.b16 %v552, %v550
    %v565 = vpack.c.b16 %v555, %v553
    %v566 = vpack.c.b16 %v556, %v554
    %v567 = vpack.c.b16 %v559, %v557
    %v568 = vpack.c.b16 %v560, %v558
    %v578 = vsel %vm90, %v528, 0
    %580 = vmatprep.subr.bf16.mxu0 %v562
    %581 = vmatpush1.bf16.msra.mxu0 %v561
    %582 = vmatprep.subr.bf16.mxu0 %v564
    %583 = vmatpush1.bf16.msra.mxu0 %v563
    %584 = vmatprep.subr.bf16.mxu0 %v566
    %585 = vmatpush1.bf16.msra.mxu0 %v565
    %586 = vmatprep.subr.bf16.mxu0 %v568
    %587 = vmatpush1.bf16.msra.mxu0 %v567
    %588 = vmatprep.subr.bf16.mxu0 0
    %589 = vmatpush1.bf16.msra.mxu0 0
    %590 = vmatprep.subr.bf16.mxu0 0
    %591 = vmatpush1.bf16.msra.mxu0 0
    %592 = vmatprep.subr.bf16.mxu0 0
    %593 = vmatpush1.bf16.msra.mxu0 0
    %594 = vmatprep.subr.bf16.mxu0 0
    %595 = vmatpush1.bf16.msra.mxu0 0
    %596 = vmatprep.subr.bf16.mxu0 0
    %597 = vmatpush1.bf16.msra.mxu0 0
    %598 = vmatprep.subr.bf16.mxu0 0
    %599 = vmatpush1.bf16.msra.mxu0 0
    %600 = vmatprep.subr.bf16.mxu0 0
    %601 = vmatpush1.bf16.msra.mxu0 0
    %602 = vmatprep.subr.bf16.mxu0 0
    %603 = vmatpush1.bf16.msra.mxu0 0
    %604 = vmatprep.subr.bf16.mxu0 0
    %605 = vmatpush1.bf16.msra.mxu0 0
    %606 = vmatprep.subr.bf16.mxu0 0
    %607 = vmatpush1.bf16.msra.mxu0 0
    %608 = vmatprep.subr.bf16.mxu0 0
    %609 = vmatpush1.bf16.msra.mxu0 0
    %610 = vmatprep.subr.bf16.mxu0 0
    %611 = vmatpush1.bf16.msra.mxu0 0
    %612 = vmatprep.mubr.bf16.mxu0 0
    %613 = vmatmul.mubr.bf16.gmra.mrb[0].mxu0 %v578
    %v614 = vpop.f32.mrb[0].mxu0
    %v615 = vadd.f32 0.0, %v614
    %v616 = vpop.f32.mrb[0].mxu0
    %v617 = vadd.f32 0.0, %v616
    %v618 = vpop.f32.mrb[0].mxu0
    %v619 = vpop.f32.mrb[0].mxu0
    %620 = vdwg.mxu0
    %s621 = scalar_lea.vmem [#allocation2], 48
    %v622 = vld [vmem:[%s621] sm:$0xff]
    %v623 = vadd.f32 %v622, %v615
    %s624 = scalar_lea.vmem [#allocation2], 64
    %v625 = vld [vmem:[%s624 + $0x8] sm:$0xff]
    %v626 = vadd.f32 %v625, %v617
    %v627 = vxor.u32 %v623, 2147483648
    %v628 = vmul.f32 %v627, 1.442695
    %v629 = vpow.pop %v628
    %v630 = vadd.f32 %v629, 1.0
    %v631 = vrcp.pop %v630
    %v632 = vmul.f32 1.0, %v631
    %v633 = vmul.f32 %v632, 2.0
    %v634 = vsub.f32 %v633, 1.0
    %v635 = vmul.f32 %v632, %v483
    %637 = vrot.lane.b32.xlu0 %v634, 64
    %v638 = vpop.permute.xlu0 %637
    %v640 = vmul.f32 %v632, %v638
    %642 = vrot.lane.b32.xlu0 %v640, 32
    %v643 = vpop.permute.xlu0 %642
    %v645 = vadd.f32 %v635, %v643
    %v646 = vtanh.pop %v645
    %648 = vrot.lane.b32.xlu0 %v646, 64
    %v649 = vpop.permute.xlu0 %648
    %v651 = vmul.f32 %v632, %v649
    %v652 = vxor.u32 %v626, 2147483648
    %v653 = vmul.f32 %v652, 1.442695
    %v654 = vpow.pop %v653
    %v655 = vadd.f32 %v654, 1.0
    %v656 = vrcp.pop %v655
    %v657 = vmul.f32 1.0, %v656
    %v658 = vmul.f32 %v657, 2.0
    %v659 = vsub.f32 %v658, 1.0
    %v660 = vmul.f32 %v657, %v508
    %662 = vrot.lane.b32.xlu0 %v659, 64
    %v663 = vpop.permute.xlu0 %662
    %v665 = vmul.f32 %v657, %v663
    %667 = vrot.lane.b32.xlu0 %v665, 32
    %v668 = vpop.permute.xlu0 %667
    %v670 = vadd.f32 %v660, %v668
    %v671 = vtanh.pop %v670
    %673 = vrot.lane.b32.xlu0 %v671, 64
    %v674 = vpop.permute.xlu0 %673
    %v676 = vmul.f32 %v657, %v674
    %678 = vrot.lane.b32.xlu0 %v651, 32
    %v679 = vpop.permute.xlu0 %678
    %s681 = scalar_lea.vmem [#allocation7], 24
    %682 = vst.msk [vmem:[%s681] sm:$0xff] %vm194, %v679
    %684 = vrot.lane.b32.xlu0 %v676, 64
    %v685 = vpop.permute.xlu0 %684
    %s687 = scalar_lea.vmem [#allocation7], 32
    %688 = vst.msk [vmem:[%s687] sm:$0xff] %vm201, %v685
    %v689 = vsel %vm194, %v679, %v685
    %v690 = vpack.c.bf16 %v689, %v689
    %v691 = vld [vmem:[#allocation5] sm:$0xff]
    %v692 = vld [vmem:[#allocation5 + $0x8] sm:$0xff]
    %v693 = vld [vmem:[#allocation5 + $0x10] sm:$0xff]
    %v694 = vld [vmem:[#allocation5 + $0x18] sm:$0xff]
    %v695 = vld [vmem:[#allocation5 + $0x20] sm:$0xff]
    %v696 = vld [vmem:[#allocation5 + $0x28] sm:$0xff]
    %v697 = vld [vmem:[#allocation5 + $0x30] sm:$0xff]
    %v698 = vld [vmem:[#allocation5 + $0x38] sm:$0xff]
    %v707 = vunpack.c.l.b16 %v691
    %v708 = vunpack.c.h.b16 %v691
    %v709 = vunpack.c.l.b16 %v692
    %v710 = vunpack.c.h.b16 %v692
    %v711 = vunpack.c.l.b16 %v693
    %v712 = vunpack.c.h.b16 %v693
    %v713 = vunpack.c.l.b16 %v694
    %v714 = vunpack.c.h.b16 %v694
    %v715 = vunpack.c.l.b16 %v695
    %v716 = vunpack.c.h.b16 %v695
    %v717 = vunpack.c.l.b16 %v696
    %v718 = vunpack.c.h.b16 %v696
    %v719 = vunpack.c.l.b16 %v697
    %v720 = vunpack.c.h.b16 %v697
    %v721 = vunpack.c.l.b16 %v698
    %v722 = vunpack.c.h.b16 %v698
    %v723 = vpack.c.b16 %v709, %v707
    %v724 = vpack.c.b16 %v710, %v708
    %v725 = vpack.c.b16 %v713, %v711
    %v726 = vpack.c.b16 %v714, %v712
    %v727 = vpack.c.b16 %v717, %v715
    %v728 = vpack.c.b16 %v718, %v716
    %v729 = vpack.c.b16 %v721, %v719
    %v730 = vpack.c.b16 %v722, %v720
    %v740 = vsel %vm90, %v690, 0
    %742 = vmatprep.subr.bf16.mxu0 %v724
    %743 = vmatpush1.bf16.msra.mxu0 %v723
    %744 = vmatprep.subr.bf16.mxu0 %v726
    %745 = vmatpush1.bf16.msra.mxu0 %v725
    %746 = vmatprep.subr.bf16.mxu0 %v728
    %747 = vmatpush1.bf16.msra.mxu0 %v727
    %748 = vmatprep.subr.bf16.mxu0 %v730
    %749 = vmatpush1.bf16.msra.mxu0 %v729
    %750 = vmatprep.subr.bf16.mxu0 0
    %751 = vmatpush1.bf16.msra.mxu0 0
    %752 = vmatprep.subr.bf16.mxu0 0
    %753 = vmatpush1.bf16.msra.mxu0 0
    %754 = vmatprep.subr.bf16.mxu0 0
    %755 = vmatpush1.bf16.msra.mxu0 0
    %756 = vmatprep.subr.bf16.mxu0 0
    %757 = vmatpush1.bf16.msra.mxu0 0
    %758 = vmatprep.subr.bf16.mxu0 0
    %759 = vmatpush1.bf16.msra.mxu0 0
    %760 = vmatprep.subr.bf16.mxu0 0
    %761 = vmatpush1.bf16.msra.mxu0 0
    %762 = vmatprep.subr.bf16.mxu0 0
    %763 = vmatpush1.bf16.msra.mxu0 0
    %764 = vmatprep.subr.bf16.mxu0 0
    %765 = vmatpush1.bf16.msra.mxu0 0
    %766 = vmatprep.subr.bf16.mxu0 0
    %767 = vmatpush1.bf16.msra.mxu0 0
    %768 = vmatprep.subr.bf16.mxu0 0
    %769 = vmatpush1.bf16.msra.mxu0 0
    %770 = vmatprep.subr.bf16.mxu0 0
    %771 = vmatpush1.bf16.msra.mxu0 0
    %772 = vmatprep.subr.bf16.mxu0 0
    %773 = vmatpush1.bf16.msra.mxu0 0
    %774 = vmatprep.mubr.bf16.mxu0 0
    %775 = vmatmul.mubr.bf16.gmra.mrb[0].mxu0 %v740
    %v776 = vpop.f32.mrb[0].mxu0
    %v777 = vadd.f32 0.0, %v776
    %v778 = vpop.f32.mrb[0].mxu0
    %v779 = vadd.f32 0.0, %v778
    %v780 = vpop.f32.mrb[0].mxu0
    %v781 = vpop.f32.mrb[0].mxu0
    %782 = vdwg.mxu0
    %v783 = vld [vmem:[%s624] sm:$0xff]
    %v784 = vadd.f32 %v783, %v777
    %v785 = vld [vmem:[%s621 + $0x8] sm:$0xff]
    %v786 = vadd.f32 %v785, %v779
    %v787 = vxor.u32 %v784, 2147483648
    %v788 = vmul.f32 %v787, 1.442695
    %v789 = vpow.pop %v788
    %v790 = vadd.f32 %v789, 1.0
    %v791 = vrcp.pop %v790
    %v792 = vmul.f32 1.0, %v791
    %v793 = vmul.f32 %v792, 2.0
    %v794 = vsub.f32 %v793, 1.0
    %v795 = vmul.f32 %v792, %v645
    %797 = vrot.lane.b32.xlu0 %v794, 64
    %v798 = vpop.permute.xlu0 %797
    %v800 = vmul.f32 %v792, %v798
    %802 = vrot.lane.b32.xlu0 %v800, 32
    %v803 = vpop.permute.xlu0 %802
    %v805 = vadd.f32 %v795, %v803
    %v806 = vtanh.pop %v805
    %808 = vrot.lane.b32.xlu0 %v806, 64
    %v809 = vpop.permute.xlu0 %808
    %v811 = vmul.f32 %v792, %v809
    %v812 = vxor.u32 %v786, 2147483648
    %v813 = vmul.f32 %v812, 1.442695
    %v814 = vpow.pop %v813
    %v815 = vadd.f32 %v814, 1.0
    %v816 = vrcp.pop %v815
    %v817 = vmul.f32 1.0, %v816
    %v818 = vmul.f32 %v817, 2.0
    %v819 = vsub.f32 %v818, 1.0
    %v820 = vmul.f32 %v817, %v670
    %822 = vrot.lane.b32.xlu0 %v819, 64
    %v823 = vpop.permute.xlu0 %822
    %v825 = vmul.f32 %v817, %v823
    %827 = vrot.lane.b32.xlu0 %v825, 32
    %v828 = vpop.permute.xlu0 %827
    %v830 = vadd.f32 %v820, %v828
    %v831 = vtanh.pop %v830
    %833 = vrot.lane.b32.xlu0 %v831, 64
    %v834 = vpop.permute.xlu0 %833
    %v836 = vmul.f32 %v817, %v834
    %838 = vrot.lane.b32.xlu0 %v811, 32
    %v839 = vpop.permute.xlu0 %838
    %841 = vst.msk [vmem:[%s687] sm:$0xff] %vm194, %v839
    %843 = vrot.lane.b32.xlu0 %v836, 64
    %v844 = vpop.permute.xlu0 %843
    %846 = vst.msk [vmem:[%s681] sm:$0xff] %vm201, %v844
    %v847 = vsel %vm194, %v839, %v844
    %v848 = vpack.c.bf16 %v847, %v847
    %v849 = vld [vmem:[#allocation5] sm:$0xff]
    %v850 = vld [vmem:[#allocation5 + $0x8] sm:$0xff]
    %v851 = vld [vmem:[#allocation5 + $0x10] sm:$0xff]
    %v852 = vld [vmem:[#allocation5 + $0x18] sm:$0xff]
    %v853 = vld [vmem:[#allocation5 + $0x20] sm:$0xff]
    %v854 = vld [vmem:[#allocation5 + $0x28] sm:$0xff]
    %v855 = vld [vmem:[#allocation5 + $0x30] sm:$0xff]
    %v856 = vld [vmem:[#allocation5 + $0x38] sm:$0xff]
    %v865 = vunpack.c.l.b16 %v849
    %v866 = vunpack.c.h.b16 %v849
    %v867 = vunpack.c.l.b16 %v850
    %v868 = vunpack.c.h.b16 %v850
    %v869 = vunpack.c.l.b16 %v851
    %v870 = vunpack.c.h.b16 %v851
    %v871 = vunpack.c.l.b16 %v852
    %v872 = vunpack.c.h.b16 %v852
    %v873 = vunpack.c.l.b16 %v853
    %v874 = vunpack.c.h.b16 %v853
    %v875 = vunpack.c.l.b16 %v854
    %v876 = vunpack.c.h.b16 %v854
    %v877 = vunpack.c.l.b16 %v855
    %v878 = vunpack.c.h.b16 %v855
    %v879 = vunpack.c.l.b16 %v856
    %v880 = vunpack.c.h.b16 %v856
    %v881 = vpack.c.b16 %v867, %v865
    %v882 = vpack.c.b16 %v868, %v866
    %v883 = vpack.c.b16 %v871, %v869
    %v884 = vpack.c.b16 %v872, %v870
    %v885 = vpack.c.b16 %v875, %v873
    %v886 = vpack.c.b16 %v876, %v874
    %v887 = vpack.c.b16 %v879, %v877
    %v888 = vpack.c.b16 %v880, %v878
    %v898 = vsel %vm90, %v848, 0
    %900 = vmatprep.subr.bf16.mxu0 %v882
    %901 = vmatpush1.bf16.msra.mxu0 %v881
    %902 = vmatprep.subr.bf16.mxu0 %v884
    %903 = vmatpush1.bf16.msra.mxu0 %v883
    %904 = vmatprep.subr.bf16.mxu0 %v886
    %905 = vmatpush1.bf16.msra.mxu0 %v885
    %906 = vmatprep.subr.bf16.mxu0 %v888
    %907 = vmatpush1.bf16.msra.mxu0 %v887
    %908 = vmatprep.subr.bf16.mxu0 0
    %909 = vmatpush1.bf16.msra.mxu0 0
    %910 = vmatprep.subr.bf16.mxu0 0
    %911 = vmatpush1.bf16.msra.mxu0 0
    %912 = vmatprep.subr.bf16.mxu0 0
    %913 = vmatpush1.bf16.msra.mxu0 0
    %914 = vmatprep.subr.bf16.mxu0 0
    %915 = vmatpush1.bf16.msra.mxu0 0
    %916 = vmatprep.subr.bf16.mxu0 0
    %917 = vmatpush1.bf16.msra.mxu0 0
    %918 = vmatprep.subr.bf16.mxu0 0
    %919 = vmatpush1.bf16.msra.mxu0 0
    %920 = vmatprep.subr.bf16.mxu0 0
    %921 = vmatpush1.bf16.msra.mxu0 0
    %922 = vmatprep.subr.bf16.mxu0 0
    %923 = vmatpush1.bf16.msra.mxu0 0
    %924 = vmatprep.subr.bf16.mxu0 0
    %925 = vmatpush1.bf16.msra.mxu0 0
    %926 = vmatprep.subr.bf16.mxu0 0
    %927 = vmatpush1.bf16.msra.mxu0 0
    %928 = vmatprep.subr.bf16.mxu0 0
    %929 = vmatpush1.bf16.msra.mxu0 0
    %930 = vmatprep.subr.bf16.mxu0 0
    %931 = vmatpush1.bf16.msra.mxu0 0
    %932 = vmatprep.mubr.bf16.mxu0 0
    %933 = vmatmul.mubr.bf16.gmra.mrb[0].mxu0 %v898
    %v934 = vpop.f32.mrb[0].mxu0
    %v935 = vadd.f32 0.0, %v934
    %v936 = vpop.f32.mrb[0].mxu0
    %v937 = vadd.f32 0.0, %v936
    %v938 = vpop.f32.mrb[0].mxu0
    %v939 = vpop.f32.mrb[0].mxu0
    %940 = vdwg.mxu0
    %v941 = vld [vmem:[%s462] sm:$0xff]
    %v942 = vadd.f32 %v941, %v935
    %v943 = vld [vmem:[%s459 + $0x8] sm:$0xff]
    %v944 = vadd.f32 %v943, %v937
    %v945 = vxor.u32 %v942, 2147483648
    %v946 = vmul.f32 %v945, 1.442695
    %v947 = vpow.pop %v946
    %v948 = vadd.f32 %v947, 1.0
    %v949 = vrcp.pop %v948
    %v950 = vmul.f32 1.0, %v949
    %v951 = vmul.f32 %v950, 2.0
    %v952 = vsub.f32 %v951, 1.0
    %v953 = vmul.f32 %v950, %v805
    %955 = vrot.lane.b32.xlu0 %v952, 64
    %v956 = vpop.permute.xlu0 %955
    %v958 = vmul.f32 %v950, %v956
    %960 = vrot.lane.b32.xlu0 %v958, 32
    %v961 = vpop.permute.xlu0 %960
    %v963 = vadd.f32 %v953, %v961
    %v964 = vtanh.pop %v963
    %966 = vrot.lane.b32.xlu0 %v964, 64
    %v967 = vpop.permute.xlu0 %966
    %v969 = vmul.f32 %v950, %v967
    %v970 = vxor.u32 %v944, 2147483648
    %v971 = vmul.f32 %v970, 1.442695
    %v972 = vpow.pop %v971
    %v973 = vadd.f32 %v972, 1.0
    %v974 = vrcp.pop %v973
    %v975 = vmul.f32 1.0, %v974
    %v976 = vmul.f32 %v975, 2.0
    %v977 = vsub.f32 %v976, 1.0
    %v978 = vmul.f32 %v975, %v830
    %980 = vrot.lane.b32.xlu0 %v977, 64
    %v981 = vpop.permute.xlu0 %980
    %v983 = vmul.f32 %v975, %v981
    %985 = vrot.lane.b32.xlu0 %v983, 32
    %v986 = vpop.permute.xlu0 %985
    %v988 = vadd.f32 %v978, %v986
    %v989 = vtanh.pop %v988
    %991 = vrot.lane.b32.xlu0 %v989, 64
    %v992 = vpop.permute.xlu0 %991
    %v994 = vmul.f32 %v975, %v992
    %996 = vrot.lane.b32.xlu0 %v969, 32
    %v997 = vpop.permute.xlu0 %996
    %999 = vst.msk [vmem:[%s525] sm:$0xff] %vm194, %v997
    %1001 = vrot.lane.b32.xlu0 %v994, 64
    %v1002 = vpop.permute.xlu0 %1001
    %1004 = vst.msk [vmem:[%s519] sm:$0xff] %vm201, %v1002
    %v1005 = vsel %vm194, %v997, %v1002
    %v1006 = vpack.c.bf16 %v1005, %v1005
    %v1007 = vld [vmem:[#allocation5] sm:$0xff]
    %v1008 = vld [vmem:[#allocation5 + $0x8] sm:$0xff]
    %v1009 = vld [vmem:[#allocation5 + $0x10] sm:$0xff]
    %v1010 = vld [vmem:[#allocation5 + $0x18] sm:$0xff]
    %v1011 = vld [vmem:[#allocation5 + $0x20] sm:$0xff]
    %v1012 = vld [vmem:[#allocation5 + $0x28] sm:$0xff]
    %v1013 = vld [vmem:[#allocation5 + $0x30] sm:$0xff]
    %v1014 = vld [vmem:[#allocation5 + $0x38] sm:$0xff]
    %v1023 = vunpack.c.l.b16 %v1007
    %v1024 = vunpack.c.h.b16 %v1007
    %v1025 = vunpack.c.l.b16 %v1008
    %v1026 = vunpack.c.h.b16 %v1008
    %v1027 = vunpack.c.l.b16 %v1009
    %v1028 = vunpack.c.h.b16 %v1009
    %v1029 = vunpack.c.l.b16 %v1010
    %v1030 = vunpack.c.h.b16 %v1010
    %v1031 = vunpack.c.l.b16 %v1011
    %v1032 = vunpack.c.h.b16 %v1011
    %v1033 = vunpack.c.l.b16 %v1012
    %v1034 = vunpack.c.h.b16 %v1012
    %v1035 = vunpack.c.l.b16 %v1013
    %v1036 = vunpack.c.h.b16 %v1013
    %v1037 = vunpack.c.l.b16 %v1014
    %v1038 = vunpack.c.h.b16 %v1014
    %v1039 = vpack.c.b16 %v1025, %v1023
    %v1040 = vpack.c.b16 %v1026, %v1024
    %v1041 = vpack.c.b16 %v1029, %v1027
    %v1042 = vpack.c.b16 %v1030, %v1028
    %v1043 = vpack.c.b16 %v1033, %v1031
    %v1044 = vpack.c.b16 %v1034, %v1032
    %v1045 = vpack.c.b16 %v1037, %v1035
    %v1046 = vpack.c.b16 %v1038, %v1036
    %v1056 = vsel %vm90, %v1006, 0
    %1058 = vmatprep.subr.bf16.mxu0 %v1040
    %1059 = vmatpush1.bf16.msra.mxu0 %v1039
    %1060 = vmatprep.subr.bf16.mxu0 %v1042
    %1061 = vmatpush1.bf16.msra.mxu0 %v1041
    %1062 = vmatprep.subr.bf16.mxu0 %v1044
    %1063 = vmatpush1.bf16.msra.mxu0 %v1043
    %1064 = vmatprep.subr.bf16.mxu0 %v1046
    %1065 = vmatpush1.bf16.msra.mxu0 %v1045
    %1066 = vmatprep.subr.bf16.mxu0 0
    %1067 = vmatpush1.bf16.msra.mxu0 0
    %1068 = vmatprep.subr.bf16.mxu0 0
    %1069 = vmatpush1.bf16.msra.mxu0 0
    %1070 = vmatprep.subr.bf16.mxu0 0
    %1071 = vmatpush1.bf16.msra.mxu0 0
    %1072 = vmatprep.subr.bf16.mxu0 0
    %1073 = vmatpush1.bf16.msra.mxu0 0
    %1074 = vmatprep.subr.bf16.mxu0 0
    %1075 = vmatpush1.bf16.msra.mxu0 0
    %1076 = vmatprep.subr.bf16.mxu0 0
    %1077 = vmatpush1.bf16.msra.mxu0 0
    %1078 = vmatprep.subr.bf16.mxu0 0
    %1079 = vmatpush1.bf16.msra.mxu0 0
    %1080 = vmatprep.subr.bf16.mxu0 0
    %1081 = vmatpush1.bf16.msra.mxu0 0
    %1082 = vmatprep.subr.bf16.mxu0 0
    %1083 = vmatpush1.bf16.msra.mxu0 0
    %1084 = vmatprep.subr.bf16.mxu0 0
    %1085 = vmatpush1.bf16.msra.mxu0 0
    %1086 = vmatprep.subr.bf16.mxu0 0
    %1087 = vmatpush1.bf16.msra.mxu0 0
    %1088 = vmatprep.subr.bf16.mxu0 0
    %1089 = vmatpush1.bf16.msra.mxu0 0
    %1090 = vmatprep.mubr.bf16.mxu0 0
    %1091 = vmatmul.mubr.bf16.gmra.mrb[0].mxu0 %v1056
    %v1092 = vpop.f32.mrb[0].mxu0
    %v1093 = vadd.f32 0.0, %v1092
    %v1094 = vpop.f32.mrb[0].mxu0
    %v1095 = vadd.f32 0.0, %v1094
    %v1096 = vpop.f32.mrb[0].mxu0
    %v1097 = vpop.f32.mrb[0].mxu0
    %1098 = vdwg.mxu0
    %v1099 = vld [vmem:[%s300] sm:$0xff]
    %v1100 = vadd.f32 %v1099, %v1093
    %v1101 = vld [vmem:[%s297 + $0x8] sm:$0xff]
    %v1102 = vadd.f32 %v1101, %v1095
    %v1103 = vxor.u32 %v1100, 2147483648
    %v1104 = vmul.f32 %v1103, 1.442695
    %v1105 = vpow.pop %v1104
    %v1106 = vadd.f32 %v1105, 1.0
    %v1107 = vrcp.pop %v1106
    %v1108 = vmul.f32 1.0, %v1107
    %v1109 = vmul.f32 %v1108, 2.0
    %v1110 = vsub.f32 %v1109, 1.0
    %v1111 = vmul.f32 %v1108, %v963
    %1113 = vrot.lane.b32.xlu0 %v1110, 64
    %v1114 = vpop.permute.xlu0 %1113
    %v1116 = vmul.f32 %v1108, %v1114
    %1118 = vrot.lane.b32.xlu0 %v1116, 32
    %v1119 = vpop.permute.xlu0 %1118
    %v1121 = vadd.f32 %v1111, %v1119
    %v1122 = vtanh.pop %v1121
    %1124 = vrot.lane.b32.xlu0 %v1122, 64
    %v1125 = vpop.permute.xlu0 %1124
    %v1127 = vmul.f32 %v1108, %v1125
    %v1128 = vxor.u32 %v1102, 2147483648
    %v1129 = vmul.f32 %v1128, 1.442695
    %v1130 = vpow.pop %v1129
    %v1131 = vadd.f32 %v1130, 1.0
    %v1132 = vrcp.pop %v1131
    %v1133 = vmul.f32 1.0, %v1132
    %v1134 = vmul.f32 %v1133, 2.0
    %v1135 = vsub.f32 %v1134, 1.0
    %v1136 = vmul.f32 %v1133, %v988
    %1138 = vrot.lane.b32.xlu0 %v1135, 64
    %v1139 = vpop.permute.xlu0 %1138
    %v1141 = vmul.f32 %v1133, %v1139
    %1143 = vrot.lane.b32.xlu0 %v1141, 32
    %v1144 = vpop.permute.xlu0 %1143
    %v1146 = vadd.f32 %v1136, %v1144
    %v1147 = vtanh.pop %v1146
    %1149 = vrot.lane.b32.xlu0 %v1147, 64
    %v1150 = vpop.permute.xlu0 %1149
    %v1152 = vmul.f32 %v1133, %v1150
    %1154 = vrot.lane.b32.xlu0 %v1127, 32
    %v1155 = vpop.permute.xlu0 %1154
    %1157 = vst.msk [vmem:[%s363] sm:$0xff] %vm194, %v1155
    %1159 = vrot.lane.b32.xlu0 %v1152, 64
    %v1160 = vpop.permute.xlu0 %1159
    %1162 = vst.msk [vmem:[%s357] sm:$0xff] %vm201, %v1160
    %v1163 = vsel %vm194, %v1155, %v1160
    %v1164 = vpack.c.bf16 %v1163, %v1163
    %v1165 = vld [vmem:[#allocation5] sm:$0xff]
    %v1166 = vld [vmem:[#allocation5 + $0x8] sm:$0xff]
    %v1167 = vld [vmem:[#allocation5 + $0x10] sm:$0xff]
    %v1168 = vld [vmem:[#allocation5 + $0x18] sm:$0xff]
    %v1169 = vld [vmem:[#allocation5 + $0x20] sm:$0xff]
    %v1170 = vld [vmem:[#allocation5 + $0x28] sm:$0xff]
    %v1171 = vld [vmem:[#allocation5 + $0x30] sm:$0xff]
    %v1172 = vld [vmem:[#allocation5 + $0x38] sm:$0xff]
    %v1181 = vunpack.c.l.b16 %v1165
    %v1182 = vunpack.c.h.b16 %v1165
    %v1183 = vunpack.c.l.b16 %v1166
    %v1184 = vunpack.c.h.b16 %v1166
    %v1185 = vunpack.c.l.b16 %v1167
    %v1186 = vunpack.c.h.b16 %v1167
    %v1187 = vunpack.c.l.b16 %v1168
    %v1188 = vunpack.c.h.b16 %v1168
    %v1189 = vunpack.c.l.b16 %v1169
    %v1190 = vunpack.c.h.b16 %v1169
    %v1191 = vunpack.c.l.b16 %v1170
    %v1192 = vunpack.c.h.b16 %v1170
    %v1193 = vunpack.c.l.b16 %v1171
    %v1194 = vunpack.c.h.b16 %v1171
    %v1195 = vunpack.c.l.b16 %v1172
    %v1196 = vunpack.c.h.b16 %v1172
    %v1197 = vpack.c.b16 %v1183, %v1181
    %v1198 = vpack.c.b16 %v1184, %v1182
    %v1199 = vpack.c.b16 %v1187, %v1185
    %v1200 = vpack.c.b16 %v1188, %v1186
    %v1201 = vpack.c.b16 %v1191, %v1189
    %v1202 = vpack.c.b16 %v1192, %v1190
    %v1203 = vpack.c.b16 %v1195, %v1193
    %v1204 = vpack.c.b16 %v1196, %v1194
    %v1214 = vsel %vm90, %v1164, 0
    %1216 = vmatprep.subr.bf16.mxu0 %v1198
    %1217 = vmatpush1.bf16.msra.mxu0 %v1197
    %1218 = vmatprep.subr.bf16.mxu0 %v1200
    %1219 = vmatpush1.bf16.msra.mxu0 %v1199
    %1220 = vmatprep.subr.bf16.mxu0 %v1202
    %1221 = vmatpush1.bf16.msra.mxu0 %v1201
    %1222 = vmatprep.subr.bf16.mxu0 %v1204
    %1223 = vmatpush1.bf16.msra.mxu0 %v1203
    %1224 = vmatprep.subr.bf16.mxu0 0
    %1225 = vmatpush1.bf16.msra.mxu0 0
    %1226 = vmatprep.subr.bf16.mxu0 0
    %1227 = vmatpush1.bf16.msra.mxu0 0
    %1228 = vmatprep.subr.bf16.mxu0 0
    %1229 = vmatpush1.bf16.msra.mxu0 0
    %1230 = vmatprep.subr.bf16.mxu0 0
    %1231 = vmatpush1.bf16.msra.mxu0 0
    %1232 = vmatprep.subr.bf16.mxu0 0
    %1233 = vmatpush1.bf16.msra.mxu0 0
    %1234 = vmatprep.subr.bf16.mxu0 0
    %1235 = vmatpush1.bf16.msra.mxu0 0
    %1236 = vmatprep.subr.bf16.mxu0 0
    %1237 = vmatpush1.bf16.msra.mxu0 0
    %1238 = vmatprep.subr.bf16.mxu0 0
    %1239 = vmatpush1.bf16.msra.mxu0 0
    %1240 = vmatprep.subr.bf16.mxu0 0
    %1241 = vmatpush1.bf16.msra.mxu0 0
    %1242 = vmatprep.subr.bf16.mxu0 0
    %1243 = vmatpush1.bf16.msra.mxu0 0
    %1244 = vmatprep.subr.bf16.mxu0 0
    %1245 = vmatpush1.bf16.msra.mxu0 0
    %1246 = vmatprep.subr.bf16.mxu0 0
    %1247 = vmatpush1.bf16.msra.mxu0 0
    %1248 = vmatprep.mubr.bf16.mxu0 0
    %1249 = vmatmul.mubr.bf16.gmra.mrb[0].mxu0 %v1214
    %v1250 = vpop.f32.mrb[0].mxu0
    %v1251 = vadd.f32 0.0, %v1250
    %v1252 = vpop.f32.mrb[0].mxu0
    %v1253 = vadd.f32 0.0, %v1252
    %v1254 = vpop.f32.mrb[0].mxu0
    %v1255 = vpop.f32.mrb[0].mxu0
    %1256 = vdwg.mxu0
    %v1257 = vld [vmem:[%s137] sm:$0xff]
    %v1258 = vadd.f32 %v1257, %v1251
    %v1259 = vld [vmem:[#allocation2 + $0x8] sm:$0xff]
    %v1260 = vadd.f32 %v1259, %v1253
    %v1261 = vxor.u32 %v1258, 2147483648
    %v1262 = vmul.f32 %v1261, 1.442695
    %v1263 = vpow.pop %v1262
    %v1264 = vadd.f32 %v1263, 1.0
    %v1265 = vrcp.pop %v1264
    %v1266 = vmul.f32 1.0, %v1265
    %v1267 = vmul.f32 %v1266, 2.0
    %v1268 = vsub.f32 %v1267, 1.0
    %v1269 = vmul.f32 %v1266, %v1121
    %1271 = vrot.lane.b32.xlu0 %v1268, 64
    %v1272 = vpop.permute.xlu0 %1271
    %v1274 = vmul.f32 %v1266, %v1272
    %1276 = vrot.lane.b32.xlu0 %v1274, 32
    %v1277 = vpop.permute.xlu0 %1276
    %v1279 = vadd.f32 %v1269, %v1277
    %v1280 = vtanh.pop %v1279
    %1282 = vrot.lane.b32.xlu0 %v1280, 64
    %v1283 = vpop.permute.xlu0 %1282
    %v1285 = vmul.f32 %v1266, %v1283
    %v1286 = vxor.u32 %v1260, 2147483648
    %v1287 = vmul.f32 %v1286, 1.442695
    %v1288 = vpow.pop %v1287
    %v1289 = vadd.f32 %v1288, 1.0
    %v1290 = vrcp.pop %v1289
    %v1291 = vmul.f32 1.0, %v1290
    %v1292 = vmul.f32 %v1291, 2.0
    %v1293 = vsub.f32 %v1292, 1.0
    %v1294 = vmul.f32 %v1291, %v1146
    %1296 = vrot.lane.b32.xlu0 %v1293, 64
    %v1297 = vpop.permute.xlu0 %1296
    %v1299 = vmul.f32 %v1291, %v1297
    %1301 = vrot.lane.b32.xlu0 %v1299, 32
    %v1302 = vpop.permute.xlu0 %1301
    %v1304 = vadd.f32 %v1294, %v1302
    %v1305 = vtanh.pop %v1304
    %1307 = vrot.lane.b32.xlu0 %v1305, 64
    %v1308 = vpop.permute.xlu0 %1307
    %v1310 = vmul.f32 %v1291, %v1308
    %1312 = vrot.lane.b32.xlu0 %v1285, 32
    %v1313 = vpop.permute.xlu0 %1312
    %1315 = vst.msk [vmem:[%s200] sm:$0xff] %vm194, %v1313
    %1317 = vrot.lane.b32.xlu0 %v1310, 64
    %v1318 = vpop.permute.xlu0 %1317
    %1320 = vst.msk [vmem:[#allocation7] sm:$0xff] %vm201, %v1318
    // Predicated region
    $region18: #{lstm_model_forward.2} parent=1 // pred_check
      _
    $region19: #{lstm_model_forward.2} parent=1 // pred_check_branch
      %1322 = sbr.rel (0) target = $region21
    $region20: #{lstm_model_forward.2} parent=1 // pred_region
      %s1324 = ssub.s32 1024, 1024
      %1325 = vsyncadd [#allocation4], %s1324
      %s1326 = sshll.u32 [#allocation7], 4
      %s1327 = int_to_ptr.vmem [resolvable:$true] %s1326
      %1332 = dma.vmem_to_hbm [thread:$0]  %s1327, 1024, %s2, [#allocation4], 128, 128, 8
    $region21: #{lstm_model_forward.2} parent=1 // pred_fallthru
      _
    // Predicated region
    $region22: #{lstm_model_forward.2} parent=1 // pred_check
      _
    $region23: #{lstm_model_forward.2} parent=1 // pred_check_branch
      %1334 = sbr.rel (0) target = $region25
    $region24: #{lstm_model_forward.2} parent=1 // pred_region
      %1335 = dma.done [#allocation4], 1024
    $region25: #{lstm_model_forward.2} parent=1 // pred_fallthru
      _
    %1336 = vsyncpa [#allocation3], 1
    %1337 = vsyncpa [#allocation6], 1
    %1338 = vsyncpa [#allocation4], 1

</llo_original>
